<compile_context>
chip_gen: v6e
topology: v6e:2x2x1
jax: 0.10.0
libtpu: 0.0.40
codegen_flags: <defaults>
</compile_context>

<pallas_src>
import functools
import math

import jax
import jax.numpy as jnp
from jax import lax
from jax.experimental import pallas as pl
from jax.experimental.pallas import tpu as pltpu

_MASK_VALUE = -1e30
# Above the 16/32 MiB scoped-VMEM default, below v7x's 64 MiB physical VMEM.
_VMEM_LIMIT = 48 * 1024 * 1024


def _fit_tile(dim, preferred):
    """Largest tile <= preferred that evenly divides dim (falls back to dim)."""
    t = min(preferred, dim)
    return t if dim % t == 0 else dim


# ---------------------------------------------------------------------------
# Kernel 1: tiled matmul + bias (c_attn and c_proj)
# ---------------------------------------------------------------------------
def _linear_kernel(x_ref, w_ref, b_ref, o_ref, acc_ref):
    @pl.when(pl.program_id(2) == 0)
    def _init():
        acc_ref[...] = jnp.zeros_like(acc_ref)

    acc_ref[...] += jnp.dot(x_ref[...], w_ref[...],
                            preferred_element_type=jnp.float32)

    @pl.when(pl.program_id(2) == pl.num_programs(2) - 1)
    def _finalize():
        o_ref[...] = (acc_ref[...] + b_ref[...]).astype(o_ref.dtype)


def pallas_linear(x, w, b, *, block_m=256, block_n=256, block_k=512):
    """y = x @ w + b with x:[M,K], w:[K,N] (pre-transposed torch weight), b:[N]."""
    M, K = x.shape
    N = w.shape[1]
    tm = _fit_tile(M, block_m)
    tn = _fit_tile(N, block_n)
    tk = _fit_tile(K, block_k)
    grid = (M // tm, N // tn, K // tk)
    return pl.pallas_call(
        _linear_kernel,
        out_shape=jax.ShapeDtypeStruct((M, N), x.dtype),
        grid=grid,
        in_specs=[
            pl.BlockSpec((tm, tk), lambda i, j, k: (i, k)),
            pl.BlockSpec((tk, tn), lambda i, j, k: (k, j)),
            pl.BlockSpec((1, tn), lambda i, j, k: (0, j)),
        ],
        out_specs=pl.BlockSpec((tm, tn), lambda i, j, k: (i, j)),
        scratch_shapes=[pltpu.VMEM((tm, tn), jnp.float32)],
        compiler_params=pltpu.CompilerParams(
            dimension_semantics=("parallel", "parallel", "arbitrary"),
            vmem_limit_bytes=_VMEM_LIMIT),
    )(x, w, b.reshape(1, N))


# ---------------------------------------------------------------------------
# Kernel 2: flash-style attention, all heads per grid step, online softmax
# ---------------------------------------------------------------------------
def _flash_attn_kernel(*refs, scale, has_mask):
    if has_mask:
        mask_ref, q_ref, k_ref, v_ref, o_ref, m_s, l_s, acc_s = refs
    else:
        q_ref, k_ref, v_ref, o_ref, m_s, l_s, acc_s = refs
    ki = pl.program_id(2)

    @pl.when(ki == 0)
    def _init():
        m_s[...] = jnp.full_like(m_s, -jnp.inf)
        l_s[...] = jnp.zeros_like(l_s)
        acc_s[...] = jnp.zeros_like(acc_s)

    # Scale folded into q (tq*hd multiplies instead of tq*tk).  MXU operands
    # stay in the input dtype; accumulation is f32; contraction is over hd with
    # a batched dot_general, so no explicit k transpose is emitted.
    q = q_ref[...] * scale                                       # (H, tq, hd)
    s = lax.dot_general(q, k_ref[...],
                        dimension_numbers=(((2,), (2,)), ((0,), (0,))),
                        preferred_element_type=jnp.float32)      # (H, tq, tk)
    if has_mask:
        keep = mask_ref[...] > 0.0                               # (tq, tk)
        s = jnp.where(keep[None, :, :], s, _MASK_VALUE)

    m_prev = m_s[...]                                            # (H, tq, 1)
    m_new = jnp.maximum(m_prev, jnp.max(s, axis=-1, keepdims=True))
    alpha = jnp.exp(m_prev - m_new)
    p = jnp.exp(s - m_new)                                       # (H, tq, tk)
    l_s[...] = alpha * l_s[...] + jnp.sum(p, axis=-1, keepdims=True)
    pv = lax.dot_general(p.astype(v_ref.dtype), v_ref[...],
                         dimension_numbers=(((2,), (1,)), ((0,), (0,))),
                         preferred_element_type=jnp.float32)     # (H, tq, hd)
    acc_s[...] = alpha * acc_s[...] + pv
    m_s[...] = m_new

    @pl.when(ki == pl.num_programs(2) - 1)
    def _finalize():
        inv_l = pl.reciprocal(l_s[...], approx=True)
        o_ref[...] = (acc_s[...] * inv_l).astype(o_ref.dtype)


def pallas_flash_attention(q, k, v, mask=None, *, block_q=128, block_k=128):
    """q:[B,H,Tq,hd], k/v:[B,H,S,hd], optional mask:[Tq,S] -> [B,H,Tq,hd]."""
    B, H, Tq, hd = q.shape
    S = k.shape[2]
    tq = _fit_tile(Tq, block_q)
    tk = _fit_tile(S, block_k)
    grid = (B, Tq // tq, S // tk)
    scale = 1.0 / math.sqrt(hd)

    q_spec = pl.BlockSpec((None, H, tq, hd), lambda b, qi, ki: (b, 0, qi, 0))
    kv_spec = pl.BlockSpec((None, H, tk, hd), lambda b, qi, ki: (b, 0, ki, 0))
    in_specs = [q_spec, kv_spec, kv_spec]
    args = [q, k, v]
    if mask is not None:
        in_specs = [pl.BlockSpec((tq, tk), lambda b, qi, ki: (qi, ki))] + in_specs
        args = [mask.astype(jnp.float32)] + args

    kernel = functools.partial(_flash_attn_kernel, scale=scale,
                               has_mask=mask is not None)
    return pl.pallas_call(
        kernel,
        out_shape=jax.ShapeDtypeStruct((B, H, Tq, hd), q.dtype),
        grid=grid,
        in_specs=in_specs,
        out_specs=q_spec,
        scratch_shapes=[
            pltpu.VMEM((H, tq, 1), jnp.float32),    # running max
            pltpu.VMEM((H, tq, 1), jnp.float32),    # running sum
            pltpu.VMEM((H, tq, hd), jnp.float32),   # output accumulator
        ],
        compiler_params=pltpu.CompilerParams(
            dimension_semantics=("parallel", "parallel", "arbitrary"),
            vmem_limit_bytes=_VMEM_LIMIT),
    )(*args)


# ---------------------------------------------------------------------------
# Module wrapper (matches CausalSelfAttention.forward semantics)
# ---------------------------------------------------------------------------
def causal_self_attention(x, params, n_head, mask=None, cache=None,
                          block_q=128, block_k=128):
    B, T, C = x.shape
    hd = C // n_head

    # c_attn: weights are stored [in, out] (== torch weight.T, done once at init).
    qkv = pallas_linear(x.reshape(B * T, C), params["w_attn"], params["b_attn"])
    q, k, v = jnp.split(qkv.reshape(B, T, 3 * C), 3, axis=2)

    # [B, T, C] -> [B, H, T, hd]
    # TODO(synk): fold this layout change into the projection / attention
    # BlockSpecs (lane-dense I/O) to remove the XLA transpose passes.
    q = q.reshape(B, T, n_head, hd).transpose(0, 2, 1, 3)
    k = k.reshape(B, T, n_head, hd).transpose(0, 2, 1, 3)
    v = v.reshape(B, T, n_head, hd).transpose(0, 2, 1, 3)

    if cache is not None:
        key_cache, value_cache = cache
        k = jnp.concatenate([key_cache, k], axis=2)
        v = jnp.concatenate([value_cache, v], axis=2)

    o = pallas_flash_attention(q, k, v, mask=mask,
                               block_q=block_q, block_k=block_k)  # [B,H,T,hd]

    o = o.transpose(0, 2, 1, 3).reshape(B * T, C)
    out = pallas_linear(o, params["w_proj"], params["b_proj"]).reshape(B, T, C)
    # attn_dropout / resid_dropout: p == 0.0 -> identity.
    return out, (k, v)


# ---------------------------------------------------------------------------
# Pure-JAX reference for verification
# ---------------------------------------------------------------------------
def reference(x, params, n_head, mask=None, cache=None):
    P = lax.Precision.HIGHEST
    B, T, C = x.shape
    hd = C // n_head
    qkv = jnp.dot(x, params["w_attn"], precision=P) + params["b_attn"]
    q, k, v = jnp.split(qkv, 3, axis=2)
    q = q.reshape(B, T, n_head, hd).transpose(0, 2, 1, 3)
    k = k.reshape(B, T, n_head, hd).transpose(0, 2, 1, 3)
    v = v.reshape(B, T, n_head, hd).transpose(0, 2, 1, 3)
    if cache is not None:
        kc, vc = cache
        k = jnp.concatenate([kc, k], axis=2)
        v = jnp.concatenate([vc, v], axis=2)
    att = jnp.einsum("bhqd,bhkd->bhqk", q, k, precision=P) / math.sqrt(hd)
    if mask is not None:
        att = jnp.where(mask.astype(bool), att, -jnp.inf)
    att = jax.nn.softmax(att, axis=-1)
    o = jnp.einsum("bhqk,bhkd->bhqd", att, v, precision=P)
    o = o.transpose(0, 2, 1, 3).reshape(B, T, C)
    out = jnp.dot(o, params["w_proj"], precision=P) + params["b_proj"]
    return out, (k, v)


if __name__ == "__main__":
    # config: n_embd=32, n_head=4, bias=True, dropout=0.0
    B, T, C, H = 2, 8, 32, 4
    hd = C // H

    key = jax.random.PRNGKey(0)
    k1, k2, k3, k4, k5, k6, k7 = jax.random.split(key, 7)
    bound = 1.0 / math.sqrt(C)
    params = {
        # Stored [in, out] (== torch nn.Linear weight.T, transposed once here).
        "w_attn": jax.random.uniform(k1, (C, 3 * C), jnp.float32, -bound, bound),
        "b_attn": jax.random.uniform(k2, (3 * C,), jnp.float32, -bound, bound),
        "w_proj": jax.random.uniform(k3, (C, C), jnp.float32, -bound, bound),
        "b_proj": jax.random.uniform(k4, (C,), jnp.float32, -bound, bound),
    }
    x = jax.random.normal(k5, (B, T, C), jnp.float32)

    attn = jax.jit(causal_self_attention,
                   static_argnames=("n_head", "block_q", "block_k"))

    # --- Test A: causal (lower-triangular) mask, no cache -------------------
    causal_mask = jnp.tril(jnp.ones((T, T), jnp.float32))
    out, (kc, vc) = attn(x, params, n_head=H, mask=causal_mask)
    jax.block_until_ready(out)
    ref_out, (ref_k, ref_v) = reference(x, params, H, mask=causal_mask)
    assert out.shape == (B, T, C)
    assert kc.shape == (B, H, T, hd) and vc.shape == (B, H, T, hd)
    assert jnp.allclose(out, ref_out, atol=2e-3, rtol=2e-3), \
        float(jnp.max(jnp.abs(out - ref_out)))
    assert jnp.allclose(kc, ref_k, atol=1e-4, rtol=1e-4)
    assert jnp.allclose(vc, ref_v, atol=1e-4, rtol=1e-4)

    # --- Test B: KV cache, no mask, multiple KV tiles (exercises the online
    #             softmax accumulation across KV grid steps) ------------------
    Tc = 8
    cache = (jax.random.normal(k6, (B, H, Tc, hd), jnp.float32),
             jax.random.normal(k7, (B, H, Tc, hd), jnp.float32))
    out2, (k_new, v_new) = attn(x, params, n_head=H, cache=cache, block_k=8)
    jax.block_until_ready(out2)
    ref_out2, (ref_k2, ref_v2) = reference(x, params, H, cache=cache)
    assert out2.shape == (B, T, C)
    assert k_new.shape == (B, H, Tc + T, hd) and v_new.shape == (B, H, Tc + T, hd)
    assert jnp.allclose(out2, ref_out2, atol=2e-3, rtol=2e-3), \
        float(jnp.max(jnp.abs(out2 - ref_out2)))
    assert jnp.allclose(k_new, ref_k2, atol=1e-4, rtol=1e-4)
    assert jnp.allclose(v_new, ref_v2, atol=1e-4, rtol=1e-4)

    print("KERNEL_OK")
</pallas_src>

<mosaic_0001>
module attributes {stable_mosaic.version = 11 : i64} {
  func.func @_linear_kernel(%arg0: i32, %arg1: i32, %arg2: i32, %arg3: memref<16x32xf32, #tpu.memory_space<vmem>>, %arg4: memref<32x96xf32, #tpu.memory_space<vmem>>, %arg5: memref<1x96xf32, #tpu.memory_space<vmem>>, %arg6: memref<16x96xf32, #tpu.memory_space<vmem>>, %arg7: memref<16x96xf32, #tpu.memory_space<vmem>>) attributes {dimension_semantics = [#tpu.dimension_semantics<parallel>, #tpu.dimension_semantics<parallel>, #tpu.dimension_semantics<arbitrary>], iteration_bounds = array<i64: 1, 1, 1>, scalar_prefetch = 0 : i64, scratch_operands = 1 : i64, tpu.core_type = #tpu.core_type<tc>, window_params = [{transform_indices = @transform_0, window_bounds = array<i64: 16, 32>}, {transform_indices = @transform_1, window_bounds = array<i64: 32, 96>}, {transform_indices = @transform_2, window_bounds = array<i64: 1, 96>}, {transform_indices = @transform_3, window_bounds = array<i64: 16, 96>}]} {
    %c0_i32 = arith.constant 0 : i32
    %0 = arith.cmpi eq, %arg2, %c0_i32 : i32
    %1 = arith.extui %0 : i1 to i32
    %c0_i32_0 = arith.constant 0 : i32
    %2 = arith.cmpi ne, %1, %c0_i32_0 : i32
    scf.if %2 {
      %cst_10 = arith.constant 0.000000e+00 : f32
      %12 = vector.broadcast %cst_10 : f32 to vector<16x96xf32>
      %c0_11 = arith.constant 0 : index
      %c0_12 = arith.constant 0 : index
      %13 = vector.load %arg7[%c0_11, %c0_12] : memref<16x96xf32, #tpu.memory_space<vmem>>, vector<16x96xf32>
      tpu.vector_store %arg7[%c0_11, %c0_12], %12 {strides = array<i32>} : memref<16x96xf32, #tpu.memory_space<vmem>>, vector<16x96xf32>,
    } else {
    }
    %c0 = arith.constant 0 : index
    %c0_1 = arith.constant 0 : index
    %3 = vector.load %arg7[%c0, %c0_1] : memref<16x96xf32, #tpu.memory_space<vmem>>, vector<16x96xf32>
    %c0_2 = arith.constant 0 : index
    %c0_3 = arith.constant 0 : index
    %4 = vector.load %arg3[%c0_2, %c0_3] : memref<16x32xf32, #tpu.memory_space<vmem>>, vector<16x32xf32>
    %c0_4 = arith.constant 0 : index
    %c0_5 = arith.constant 0 : index
    %5 = vector.load %arg4[%c0_4, %c0_5] : memref<32x96xf32, #tpu.memory_space<vmem>>, vector<32x96xf32>
    %cst = arith.constant dense<0.000000e+00> : vector<16x96xf32>
    %6 = tpu.matmul %4, %5, %cst {dimension_numbers = #tpu.dot_dimension_numbers<[1], [0], [0], [1], [0, 0, 1, 1], [], []>} : vector<16x32xf32>, vector<32x96xf32>, vector<16x96xf32> -> vector<16x96xf32>
    %7 = arith.addf %3, %6 : vector<16x96xf32>
    %c0_6 = arith.constant 0 : index
    %c0_7 = arith.constant 0 : index
    %8 = vector.load %arg7[%c0_6, %c0_7] : memref<16x96xf32, #tpu.memory_space<vmem>>, vector<16x96xf32>
    tpu.vector_store %arg7[%c0_6, %c0_7], %7 {strides = array<i32>} : memref<16x96xf32, #tpu.memory_space<vmem>>, vector<16x96xf32>,
    %c0_i32_8 = arith.constant 0 : i32
    %9 = arith.cmpi eq, %arg2, %c0_i32_8 : i32
    %10 = arith.extui %9 : i1 to i32
    %c0_i32_9 = arith.constant 0 : i32
    %11 = arith.cmpi ne, %10, %c0_i32_9 : i32
    scf.if %11 {
      %c0_10 = arith.constant 0 : index
      %c0_11 = arith.constant 0 : index
      %12 = vector.load %arg7[%c0_10, %c0_11] : memref<16x96xf32, #tpu.memory_space<vmem>>, vector<16x96xf32>
      %c0_12 = arith.constant 0 : index
      %c0_13 = arith.constant 0 : index
      %13 = vector.load %arg5[%c0_12, %c0_13] : memref<1x96xf32, #tpu.memory_space<vmem>>, vector<1x96xf32>
      %14 = vector.broadcast %13 : vector<1x96xf32> to vector<16x96xf32>
      %15 = arith.addf %12, %14 : vector<16x96xf32>
      %c0_14 = arith.constant 0 : index
      %c0_15 = arith.constant 0 : index
      %16 = vector.load %arg6[%c0_14, %c0_15] : memref<16x96xf32, #tpu.memory_space<vmem>>, vector<16x96xf32>
      tpu.vector_store %arg6[%c0_14, %c0_15], %15 {strides = array<i32>} : memref<16x96xf32, #tpu.memory_space<vmem>>, vector<16x96xf32>,
    } else {
    }
    return
  }
  func.func @transform_0(%arg0: i32, %arg1: i32, %arg2: i32) -> (i32, i32) {
    %c0_i32 = arith.constant 0 : i32
    return %arg0, %arg2 : i32, i32
  }
  func.func @transform_1(%arg0: i32, %arg1: i32, %arg2: i32) -> (i32, i32) {
    %c0_i32 = arith.constant 0 : i32
    return %arg2, %arg1 : i32, i32
  }
  func.func @transform_2(%arg0: i32, %arg1: i32, %arg2: i32) -> (i32, i32) {
    %c0_i32 = arith.constant 0 : i32
    %c0_i32_0 = arith.constant 0 : i32
    return %c0_i32, %arg1 : i32, i32
  }
  func.func @transform_3(%arg0: i32, %arg1: i32, %arg2: i32) -> (i32, i32) {
    %c0_i32 = arith.constant 0 : i32
    return %arg0, %arg1 : i32, i32
  }
}

module attributes {stable_mosaic.version = 11 : i64} {
  func.func @_flash_attn_kernel(%arg0: i32, %arg1: i32, %arg2: i32, %arg3: memref<8x8xf32, #tpu.memory_space<vmem>>, %arg4: memref<1x4x8x8xf32, #tpu.memory_space<vmem>>, %arg5: memref<1x4x8x8xf32, #tpu.memory_space<vmem>>, %arg6: memref<1x4x8x8xf32, #tpu.memory_space<vmem>>, %arg7: memref<1x4x8x8xf32, #tpu.memory_space<vmem>>, %arg8: memref<4x8x1xf32, #tpu.memory_space<vmem>>, %arg9: memref<4x8x1xf32, #tpu.memory_space<vmem>>, %arg10: memref<4x8x8xf32, #tpu.memory_space<vmem>>) attributes {dimension_semantics = [#tpu.dimension_semantics<parallel>, #tpu.dimension_semantics<parallel>, #tpu.dimension_semantics<arbitrary>], iteration_bounds = array<i64: 2, 1, 1>, scalar_prefetch = 0 : i64, scratch_operands = 3 : i64, tpu.core_type = #tpu.core_type<tc>, window_params = [{transform_indices = @transform_0, window_bounds = array<i64: 8, 8>}, {transform_indices = @transform_1, window_bounds = array<i64: 1, 4, 8, 8>}, {transform_indices = @transform_2, window_bounds = array<i64: 1, 4, 8, 8>}, {transform_indices = @transform_3, window_bounds = array<i64: 1, 4, 8, 8>}, {transform_indices = @transform_4, window_bounds = array<i64: 1, 4, 8, 8>}]} {
    %c0_i32 = arith.constant 0 : i32
    %0 = arith.cmpi eq, %arg2, %c0_i32 : i32
    %1 = arith.extui %0 : i1 to i32
    %c0_i32_0 = arith.constant 0 : i32
    %2 = arith.cmpi ne, %1, %c0_i32_0 : i32
    scf.if %2 {
      %cst_40 = arith.constant 0xFF800000 : f32
      %45 = vector.broadcast %cst_40 : f32 to vector<4x8x1xf32>
      %c0_41 = arith.constant 0 : index
      %c0_42 = arith.constant 0 : index
      %c0_43 = arith.constant 0 : index
      %46 = vector.load %arg8[%c0_41, %c0_42, %c0_43] : memref<4x8x1xf32, #tpu.memory_space<vmem>>, vector<4x8x1xf32>
      tpu.vector_store %arg8[%c0_41, %c0_42, %c0_43], %45 {strides = array<i32>} : memref<4x8x1xf32, #tpu.memory_space<vmem>>, vector<4x8x1xf32>,
      %cst_44 = arith.constant 0.000000e+00 : f32
      %47 = vector.broadcast %cst_44 : f32 to vector<4x8x1xf32>
      %c0_45 = arith.constant 0 : index
      %c0_46 = arith.constant 0 : index
      %c0_47 = arith.constant 0 : index
      %48 = vector.load %arg9[%c0_45, %c0_46, %c0_47] : memref<4x8x1xf32, #tpu.memory_space<vmem>>, vector<4x8x1xf32>
      tpu.vector_store %arg9[%c0_45, %c0_46, %c0_47], %47 {strides = array<i32>} : memref<4x8x1xf32, #tpu.memory_space<vmem>>, vector<4x8x1xf32>,
      %cst_48 = arith.constant 0.000000e+00 : f32
      %49 = vector.broadcast %cst_48 : f32 to vector<4x8x8xf32>
      %c0_49 = arith.constant 0 : index
      %c0_50 = arith.constant 0 : index
      %c0_51 = arith.constant 0 : index
      %50 = vector.load %arg10[%c0_49, %c0_50, %c0_51] : memref<4x8x8xf32, #tpu.memory_space<vmem>>, vector<4x8x8xf32>
      tpu.vector_store %arg10[%c0_49, %c0_50, %c0_51], %49 {strides = array<i32>} : memref<4x8x8xf32, #tpu.memory_space<vmem>>, vector<4x8x8xf32>,
    } else {
    }
    %c0 = arith.constant 0 : index
    %c0_1 = arith.constant 0 : index
    %c0_2 = arith.constant 0 : index
    %c0_3 = arith.constant 0 : index
    %3 = vector.load %arg4[%c0, %c0_1, %c0_2, %c0_3] : memref<1x4x8x8xf32, #tpu.memory_space<vmem>>, vector<1x4x8x8xf32>
    %4 = vector.shape_cast %3 : vector<1x4x8x8xf32> to vector<4x8x8xf32>
    %cst = arith.constant 0.353553385 : f32
    %5 = vector.broadcast %cst : f32 to vector<4x8x8xf32>
    %6 = arith.mulf %4, %5 : vector<4x8x8xf32>
    %c0_4 = arith.constant 0 : index
    %c0_5 = arith.constant 0 : index
    %c0_6 = arith.constant 0 : index
    %c0_7 = arith.constant 0 : index
    %7 = vector.load %arg5[%c0_4, %c0_5, %c0_6, %c0_7] : memref<1x4x8x8xf32, #tpu.memory_space<vmem>>, vector<1x4x8x8xf32>
    %8 = vector.shape_cast %7 : vector<1x4x8x8xf32> to vector<4x8x8xf32>
    %cst_8 = arith.constant dense<0.000000e+00> : vector<4x8x8xf32>
    %9 = tpu.matmul %6, %8, %cst_8 {dimension_numbers = #tpu.dot_dimension_numbers<[2], [2], [1], [1], [0, 0, 0, 1, 1, 1], [0], [0]>} : vector<4x8x8xf32>, vector<4x8x8xf32>, vector<4x8x8xf32> -> vector<4x8x8xf32>
    %c0_9 = arith.constant 0 : index
    %c0_10 = arith.constant 0 : index
    %10 = vector.load %arg3[%c0_9, %c0_10] : memref<8x8xf32, #tpu.memory_space<vmem>>, vector<8x8xf32>
    %cst_11 = arith.constant 0.000000e+00 : f32
    %11 = vector.broadcast %cst_11 : f32 to vector<8x8xf32>
    %12 = arith.cmpf ogt, %10, %11 : vector<8x8xf32>
    %13 = vector.shape_cast %12 : vector<8x8xi1> to vector<1x8x8xi1>
    %cst_12 = arith.constant -1.000000e+30 : f32
    %14 = vector.shape_cast %13 : vector<1x8x8xi1> to vector<1x8x8xi1>
    %15 = vector.broadcast %14 : vector<1x8x8xi1> to vector<4x8x8xi1>
    %16 = vector.broadcast %cst_12 : f32 to vector<4x8x8xf32>
    %17 = arith.select %15, %9, %16 : vector<4x8x8xi1>, vector<4x8x8xf32>
    %c0_13 = arith.constant 0 : index
    %c0_14 = arith.constant 0 : index
    %c0_15 = arith.constant 0 : index
    %18 = vector.load %arg8[%c0_13, %c0_14, %c0_15] : memref<4x8x1xf32, #tpu.memory_space<vmem>>, vector<4x8x1xf32>
    %cst_16 = arith.constant dense<0xFF800000> : vector<4x8xf32>
    %19 = vector.multi_reduction <maximumf>, %17, %cst_16 [2] : vector<4x8x8xf32> to vector<4x8xf32>
    %20 = vector.shape_cast %19 : vector<4x8xf32> to vector<4x8x1xf32>
    %21 = arith.maximumf %18, %20 : vector<4x8x1xf32>
    %22 = arith.subf %18, %21 : vector<4x8x1xf32>
    %23 = math.exp %22 : vector<4x8x1xf32>
    %24 = vector.broadcast %21 : vector<4x8x1xf32> to vector<4x8x8xf32>
    %25 = arith.subf %17, %24 : vector<4x8x8xf32>
    %26 = math.exp %25 : vector<4x8x8xf32>
    %c0_17 = arith.constant 0 : index
    %c0_18 = arith.constant 0 : index
    %c0_19 = arith.constant 0 : index
    %27 = vector.load %arg9[%c0_17, %c0_18, %c0_19] : memref<4x8x1xf32, #tpu.memory_space<vmem>>, vector<4x8x1xf32>
    %28 = arith.mulf %23, %27 : vector<4x8x1xf32>
    %cst_20 = arith.constant dense<0.000000e+00> : vector<4x8xf32>
    %29 = vector.multi_reduction <add>, %26, %cst_20 [2] : vector<4x8x8xf32> to vector<4x8xf32>
    %30 = vector.shape_cast %29 : vector<4x8xf32> to vector<4x8x1xf32>
    %31 = arith.addf %28, %30 : vector<4x8x1xf32>
    %c0_21 = arith.constant 0 : index
    %c0_22 = arith.constant 0 : index
    %c0_23 = arith.constant 0 : index
    %32 = vector.load %arg9[%c0_21, %c0_22, %c0_23] : memref<4x8x1xf32, #tpu.memory_space<vmem>>, vector<4x8x1xf32>
    tpu.vector_store %arg9[%c0_21, %c0_22, %c0_23], %31 {strides = array<i32>} : memref<4x8x1xf32, #tpu.memory_space<vmem>>, vector<4x8x1xf32>,
    %c0_24 = arith.constant 0 : index
    %c0_25 = arith.constant 0 : index
    %c0_26 = arith.constant 0 : index
    %c0_27 = arith.constant 0 : index
    %33 = vector.load %arg6[%c0_24, %c0_25, %c0_26, %c0_27] : memref<1x4x8x8xf32, #tpu.memory_space<vmem>>, vector<1x4x8x8xf32>
    %34 = vector.shape_cast %33 : vector<1x4x8x8xf32> to vector<4x8x8xf32>
    %cst_28 = arith.constant dense<0.000000e+00> : vector<4x8x8xf32>
    %35 = tpu.matmul %26, %34, %cst_28 {dimension_numbers = #tpu.dot_dimension_numbers<[2], [1], [1], [2], [0, 0, 0, 1, 1, 2], [0], [0]>} : vector<4x8x8xf32>, vector<4x8x8xf32>, vector<4x8x8xf32> -> vector<4x8x8xf32>
    %c0_29 = arith.constant 0 : index
    %c0_30 = arith.constant 0 : index
    %c0_31 = arith.constant 0 : index
    %36 = vector.load %arg10[%c0_29, %c0_30, %c0_31] : memref<4x8x8xf32, #tpu.memory_space<vmem>>, vector<4x8x8xf32>
    %37 = vector.broadcast %23 : vector<4x8x1xf32> to vector<4x8x8xf32>
    %38 = arith.mulf %37, %36 : vector<4x8x8xf32>
    %39 = arith.addf %38, %35 : vector<4x8x8xf32>
    %c0_32 = arith.constant 0 : index
    %c0_33 = arith.constant 0 : index
    %c0_34 = arith.constant 0 : index
    %40 = vector.load %arg10[%c0_32, %c0_33, %c0_34] : memref<4x8x8xf32, #tpu.memory_space<vmem>>, vector<4x8x8xf32>
    tpu.vector_store %arg10[%c0_32, %c0_33, %c0_34], %39 {strides = array<i32>} : memref<4x8x8xf32, #tpu.memory_space<vmem>>, vector<4x8x8xf32>,
    %c0_35 = arith.constant 0 : index
    %c0_36 = arith.constant 0 : index
    %c0_37 = arith.constant 0 : index
    %41 = vector.load %arg8[%c0_35, %c0_36, %c0_37] : memref<4x8x1xf32, #tpu.memory_space<vmem>>, vector<4x8x1xf32>
    tpu.vector_store %arg8[%c0_35, %c0_36, %c0_37], %21 {strides = array<i32>} : memref<4x8x1xf32, #tpu.memory_space<vmem>>, vector<4x8x1xf32>,
    %c0_i32_38 = arith.constant 0 : i32
    %42 = arith.cmpi eq, %arg2, %c0_i32_38 : i32
    %43 = arith.extui %42 : i1 to i32
    %c0_i32_39 = arith.constant 0 : i32
    %44 = arith.cmpi ne, %43, %c0_i32_39 : i32
    scf.if %44 {
      %c0_40 = arith.constant 0 : index
      %c0_41 = arith.constant 0 : index
      %c0_42 = arith.constant 0 : index
      %45 = vector.load %arg9[%c0_40, %c0_41, %c0_42] : memref<4x8x1xf32, #tpu.memory_space<vmem>>, vector<4x8x1xf32>
      %46 = tpu.reciprocal %45 {approx = true} : vector<4x8x1xf32> -> vector<4x8x1xf32>
      %c0_43 = arith.constant 0 : index
      %c0_44 = arith.constant 0 : index
      %c0_45 = arith.constant 0 : index
      %47 = vector.load %arg10[%c0_43, %c0_44, %c0_45] : memref<4x8x8xf32, #tpu.memory_space<vmem>>, vector<4x8x8xf32>
      %48 = vector.broadcast %46 : vector<4x8x1xf32> to vector<4x8x8xf32>
      %49 = arith.mulf %47, %48 : vector<4x8x8xf32>
      %c0_46 = arith.constant 0 : index
      %c0_47 = arith.constant 0 : index
      %c0_48 = arith.constant 0 : index
      %c0_49 = arith.constant 0 : index
      %50 = vector.load %arg7[%c0_46, %c0_47, %c0_48, %c0_49] : memref<1x4x8x8xf32, #tpu.memory_space<vmem>>, vector<1x4x8x8xf32>
      %51 = vector.shape_cast %50 : vector<1x4x8x8xf32> to vector<4x8x8xf32>
      %52 = vector.shape_cast %49 : vector<4x8x8xf32> to vector<1x4x8x8xf32>
      tpu.vector_store %arg7[%c0_46, %c0_47, %c0_48, %c0_49], %52 {strides = array<i32>} : memref<1x4x8x8xf32, #tpu.memory_space<vmem>>, vector<1x4x8x8xf32>,
    } else {
    }
    return
  }
  func.func @transform_0(%arg0: i32, %arg1: i32, %arg2: i32) -> (i32, i32) {
    %c0_i32 = arith.constant 0 : i32
    return %arg1, %arg2 : i32, i32
  }
  func.func @transform_1(%arg0: i32, %arg1: i32, %arg2: i32) -> (i32, i32, i32, i32) {
    %c0_i32 = arith.constant 0 : i32
    %c0_i32_0 = arith.constant 0 : i32
    %c0_i32_1 = arith.constant 0 : i32
    return %arg0, %c0_i32, %arg1, %c0_i32_0 : i32, i32, i32, i32
  }
  func.func @transform_2(%arg0: i32, %arg1: i32, %arg2: i32) -> (i32, i32, i32, i32) {
    %c0_i32 = arith.constant 0 : i32
    %c0_i32_0 = arith.constant 0 : i32
    %c0_i32_1 = arith.constant 0 : i32
    return %arg0, %c0_i32, %arg2, %c0_i32_0 : i32, i32, i32, i32
  }
  func.func @transform_3(%arg0: i32, %arg1: i32, %arg2: i32) -> (i32, i32, i32, i32) {
    %c0_i32 = arith.constant 0 : i32
    %c0_i32_0 = arith.constant 0 : i32
    %c0_i32_1 = arith.constant 0 : i32
    return %arg0, %c0_i32, %arg2, %c0_i32_0 : i32, i32, i32, i32
  }
  func.func @transform_4(%arg0: i32, %arg1: i32, %arg2: i32) -> (i32, i32, i32, i32) {
    %c0_i32 = arith.constant 0 : i32
    %c0_i32_0 = arith.constant 0 : i32
    %c0_i32_1 = arith.constant 0 : i32
    return %arg0, %c0_i32, %arg1, %c0_i32_0 : i32, i32, i32, i32
  }
}

module attributes {stable_mosaic.version = 11 : i64} {
  func.func @_linear_kernel(%arg0: i32, %arg1: i32, %arg2: i32, %arg3: memref<16x32xf32, #tpu.memory_space<vmem>>, %arg4: memref<32x32xf32, #tpu.memory_space<vmem>>, %arg5: memref<1x32xf32, #tpu.memory_space<vmem>>, %arg6: memref<16x32xf32, #tpu.memory_space<vmem>>, %arg7: memref<16x32xf32, #tpu.memory_space<vmem>>) attributes {dimension_semantics = [#tpu.dimension_semantics<parallel>, #tpu.dimension_semantics<parallel>, #tpu.dimension_semantics<arbitrary>], iteration_bounds = array<i64: 1, 1, 1>, scalar_prefetch = 0 : i64, scratch_operands = 1 : i64, tpu.core_type = #tpu.core_type<tc>, window_params = [{transform_indices = @transform_0, window_bounds = array<i64: 16, 32>}, {transform_indices = @transform_1, window_bounds = array<i64: 32, 32>}, {transform_indices = @transform_2, window_bounds = array<i64: 1, 32>}, {transform_indices = @transform_3, window_bounds = array<i64: 16, 32>}]} {
    %c0_i32 = arith.constant 0 : i32
    %0 = arith.cmpi eq, %arg2, %c0_i32 : i32
    %1 = arith.extui %0 : i1 to i32
    %c0_i32_0 = arith.constant 0 : i32
    %2 = arith.cmpi ne, %1, %c0_i32_0 : i32
    scf.if %2 {
      %cst_10 = arith.constant 0.000000e+00 : f32
      %12 = vector.broadcast %cst_10 : f32 to vector<16x32xf32>
      %c0_11 = arith.constant 0 : index
      %c0_12 = arith.constant 0 : index
      %13 = vector.load %arg7[%c0_11, %c0_12] : memref<16x32xf32, #tpu.memory_space<vmem>>, vector<16x32xf32>
      tpu.vector_store %arg7[%c0_11, %c0_12], %12 {strides = array<i32>} : memref<16x32xf32, #tpu.memory_space<vmem>>, vector<16x32xf32>,
    } else {
    }
    %c0 = arith.constant 0 : index
    %c0_1 = arith.constant 0 : index
    %3 = vector.load %arg7[%c0, %c0_1] : memref<16x32xf32, #tpu.memory_space<vmem>>, vector<16x32xf32>
    %c0_2 = arith.constant 0 : index
    %c0_3 = arith.constant 0 : index
    %4 = vector.load %arg3[%c0_2, %c0_3] : memref<16x32xf32, #tpu.memory_space<vmem>>, vector<16x32xf32>
    %c0_4 = arith.constant 0 : index
    %c0_5 = arith.constant 0 : index
    %5 = vector.load %arg4[%c0_4, %c0_5] : memref<32x32xf32, #tpu.memory_space<vmem>>, vector<32x32xf32>
    %cst = arith.constant dense<0.000000e+00> : vector<16x32xf32>
    %6 = tpu.matmul %4, %5, %cst {dimension_numbers = #tpu.dot_dimension_numbers<[1], [0], [0], [1], [0, 0, 1, 1], [], []>} : vector<16x32xf32>, vector<32x32xf32>, vector<16x32xf32> -> vector<16x32xf32>
    %7 = arith.addf %3, %6 : vector<16x32xf32>
    %c0_6 = arith.constant 0 : index
    %c0_7 = arith.constant 0 : index
    %8 = vector.load %arg7[%c0_6, %c0_7] : memref<16x32xf32, #tpu.memory_space<vmem>>, vector<16x32xf32>
    tpu.vector_store %arg7[%c0_6, %c0_7], %7 {strides = array<i32>} : memref<16x32xf32, #tpu.memory_space<vmem>>, vector<16x32xf32>,
    %c0_i32_8 = arith.constant 0 : i32
    %9 = arith.cmpi eq, %arg2, %c0_i32_8 : i32
    %10 = arith.extui %9 : i1 to i32
    %c0_i32_9 = arith.constant 0 : i32
    %11 = arith.cmpi ne, %10, %c0_i32_9 : i32
    scf.if %11 {
      %c0_10 = arith.constant 0 : index
      %c0_11 = arith.constant 0 : index
      %12 = vector.load %arg7[%c0_10, %c0_11] : memref<16x32xf32, #tpu.memory_space<vmem>>, vector<16x32xf32>
      %c0_12 = arith.constant 0 : index
      %c0_13 = arith.constant 0 : index
      %13 = vector.load %arg5[%c0_12, %c0_13] : memref<1x32xf32, #tpu.memory_space<vmem>>, vector<1x32xf32>
      %14 = vector.broadcast %13 : vector<1x32xf32> to vector<16x32xf32>
      %15 = arith.addf %12, %14 : vector<16x32xf32>
      %c0_14 = arith.constant 0 : index
      %c0_15 = arith.constant 0 : index
      %16 = vector.load %arg6[%c0_14, %c0_15] : memref<16x32xf32, #tpu.memory_space<vmem>>, vector<16x32xf32>
      tpu.vector_store %arg6[%c0_14, %c0_15], %15 {strides = array<i32>} : memref<16x32xf32, #tpu.memory_space<vmem>>, vector<16x32xf32>,
    } else {
    }
    return
  }
  func.func @transform_0(%arg0: i32, %arg1: i32, %arg2: i32) -> (i32, i32) {
    %c0_i32 = arith.constant 0 : i32
    return %arg0, %arg2 : i32, i32
  }
  func.func @transform_1(%arg0: i32, %arg1: i32, %arg2: i32) -> (i32, i32) {
    %c0_i32 = arith.constant 0 : i32
    return %arg2, %arg1 : i32, i32
  }
  func.func @transform_2(%arg0: i32, %arg1: i32, %arg2: i32) -> (i32, i32) {
    %c0_i32 = arith.constant 0 : i32
    %c0_i32_0 = arith.constant 0 : i32
    return %c0_i32, %arg1 : i32, i32
  }
  func.func @transform_3(%arg0: i32, %arg1: i32, %arg2: i32) -> (i32, i32) {
    %c0_i32 = arith.constant 0 : i32
    return %arg0, %arg1 : i32, i32
  }
}

</mosaic_0001>

<llo_original>
// kernel: causal_self_attention.5
$region0: #{causal_self_attention.5}
  #allocation0 [shape = 'u32[]', space=smem, size = 0x4, offset = 0x4, fixed_abs, tag = 'smem constant byte address 0x4 - core index']
  #allocation1 [shape = 'u32[144,128]{1,0:T(1,128)}', space=vmem, size = 0x12000, scoped, tag = 'internal scratch']
  #allocation2 [shape = 'f32[16,32]{1,0:T(8,128)}', space=vmem, size = 0x2000, scoped, tag = 'scratch operand']
  %s0 = inlined_call_operand.vmem [shape: f32[16,32], index: 0, kind: input, shape index: {}]
  %s1 = inlined_call_operand.vmem [shape: f32[32,32], index: 1, kind: input, shape index: {}]
  %s2 = inlined_call_operand.vmem [shape: f32[1,32], index: 2, kind: input, shape index: {}]
  %s3 = inlined_call_operand.hbm [shape: f32[16,32], index: 3, kind: output, shape index: {}]
  %s4 = sld [smem:[#allocation0]]
  $region30: #{causal_self_attention.5} parent=0
    _
  %s6 = ssub.s32 1, %s4
  %s7 = scalar_select 0, %s6, %s4
  $region1: #{causal_self_attention.5} parent=0
    #allocation3 [shape = 'u8[8192]{0}', space=vmem, size = 0x2000, scoped, tag = 'output window, operand 0, single buffered']
    #allocation4 [shape = 's32[1]{0}', space=sflag, size = 0x4, scoped, tag = 'scoped memory for causal_self_attention.5']
    %8 = vsyncpa [#allocation4], 0
    // Predicated region
    $region2: #{causal_self_attention.5} parent=1 // pred_check
      _
    $region3: #{causal_self_attention.5} parent=1 // pred_check_branch
      %10 = sbr.rel (0) target = $region5
    $region4: #{causal_self_attention.5} parent=1 // pred_region
      _
    $region5: #{causal_self_attention.5} parent=1 // pred_fallthru
      _
    // Predicated region
    $region6: #{causal_self_attention.5} parent=1 // pred_check
      _
    $region7: #{causal_self_attention.5} parent=1 // pred_check_branch
      %12 = sbr.rel (0) target = $region9
    $region8: #{causal_self_attention.5} parent=1 // pred_region
      _
    $region9: #{causal_self_attention.5} parent=1 // pred_fallthru
      _
    // Predicated region
    $region10: #{causal_self_attention.5} parent=1 // pred_check
      _
    $region11: #{causal_self_attention.5} parent=1 // pred_check_branch
      %14 = sbr.rel (0) target = $region13
    $region12: #{causal_self_attention.5} parent=1 // pred_region
      _
    $region13: #{causal_self_attention.5} parent=1 // pred_fallthru
      _
    %p15 = scmp.eq.s32.totalorder 0, 0
    // Predicated region
    $region14: #{causal_self_attention.5} parent=1 // pred_check
      %p16 = pneg %p15
    $region15: #{causal_self_attention.5} parent=1 // pred_check_branch
      %18 = sbr.rel (%p16) target = $region17
    $region16: #{causal_self_attention.5} parent=1 // pred_region
      %vm19 = vcmask 261120
      %20 = vst.msk [vmem:[#allocation2] sm:$0xff] %vm19, 0.0
      %21 = vst.msk [vmem:[#allocation2 + $0x8] sm:$0xff] %vm19, 0.0
    $region17: #{causal_self_attention.5} parent=1 // pred_fallthru
      _
    %v22 = vld [vmem:[#allocation2] sm:$0xff]
    %v23 = vld [vmem:[#allocation2 + $0x8] sm:$0xff]
    %v24 = vld [vmem:[%s0] sm:$0xff]
    %v25 = vld [vmem:[%s0 + $0x8] sm:$0xff]
    %v26 = vld [vmem:[%s1] sm:$0xff]
    %v27 = vld [vmem:[%s1 + $0x8] sm:$0xff]
    %v28 = vld [vmem:[%s1 + $0x10] sm:$0xff]
    %v29 = vld [vmem:[%s1 + $0x18] sm:$0xff]
    %vm30 = vcmask 261120
    %v32 = vsel %vm30, %v24, 0
    %v35 = vsel %vm30, %v25, 0
    %37 = vmatprep.subr.mxu0 0.0
    %38 = vmatpush1.msra.mxu0 0.0
    %39 = vmatprep.subr.mxu0 0.0
    %40 = vmatpush1.msra.mxu0 0.0
    %41 = vmatprep.subr.mxu0 0.0
    %42 = vmatpush1.msra.mxu0 0.0
    %43 = vmatprep.subr.mxu0 0.0
    %44 = vmatpush1.msra.mxu0 0.0
    %45 = vmatprep.subr.mxu0 0.0
    %46 = vmatpush1.msra.mxu0 0.0
    %47 = vmatprep.subr.mxu0 0.0
    %48 = vmatpush1.msra.mxu0 0.0
    %49 = vmatprep.subr.mxu0 0.0
    %50 = vmatpush1.msra.mxu0 0.0
    %51 = vmatprep.subr.mxu0 0.0
    %52 = vmatpush1.msra.mxu0 0.0
    %53 = vmatprep.subr.mxu0 0.0
    %54 = vmatpush1.msra.mxu0 0.0
    %55 = vmatprep.subr.mxu0 0.0
    %56 = vmatpush1.msra.mxu0 0.0
    %57 = vmatprep.subr.mxu0 0.0
    %58 = vmatpush1.msra.mxu0 0.0
    %59 = vmatprep.subr.mxu0 0.0
    %60 = vmatpush1.msra.mxu0 0.0
    %61 = vmatprep.subr.mxu0 0.0
    %62 = vmatpush1.msra.mxu0 %v29
    %63 = vmatprep.subr.mxu0 0.0
    %64 = vmatpush1.msra.mxu0 %v28
    %65 = vmatprep.subr.mxu0 0.0
    %66 = vmatpush1.msra.mxu0 %v27
    %67 = vmatprep.subr.mxu0 0.0
    %68 = vmatpush1.msra.mxu0 %v26
    %69 = vmatprep.subr.mxu0 0.0
    %70 = vmatpush2.msra.mxu0 0.0
    %71 = vmatprep.subr.mxu0 0.0
    %72 = vmatpush2.msra.mxu0 0.0
    %73 = vmatprep.subr.mxu0 0.0
    %74 = vmatpush2.msra.mxu0 0.0
    %75 = vmatprep.subr.mxu0 0.0
    %76 = vmatpush2.msra.mxu0 0.0
    %77 = vmatprep.subr.mxu0 0.0
    %78 = vmatpush2.msra.mxu0 0.0
    %79 = vmatprep.subr.mxu0 0.0
    %80 = vmatpush2.msra.mxu0 0.0
    %81 = vmatprep.subr.mxu0 0.0
    %82 = vmatpush2.msra.mxu0 0.0
    %83 = vmatprep.subr.mxu0 0.0
    %84 = vmatpush2.msra.mxu0 0.0
    %85 = vmatprep.subr.mxu0 0.0
    %86 = vmatpush2.msra.mxu0 0.0
    %87 = vmatprep.subr.mxu0 0.0
    %88 = vmatpush2.msra.mxu0 0.0
    %89 = vmatprep.subr.mxu0 0.0
    %90 = vmatpush2.msra.mxu0 0.0
    %91 = vmatprep.subr.mxu0 0.0
    %92 = vmatpush2.msra.mxu0 0.0
    %93 = vmatprep.subr.mxu0 0.0
    %94 = vmatpush2.msra.mxu0 0.0
    %95 = vmatprep.subr.mxu0 0.0
    %96 = vmatpush2.msra.mxu0 0.0
    %97 = vmatprep.subr.mxu0 0.0
    %98 = vmatpush2.msra.mxu0 0.0
    %99 = vmatprep.subr.mxu0 0.0
    %100 = vmatpush2.msra.mxu0 0.0
    %101 = vmatprep.mubr.f32.mxu0 0.0
    %102 = vmatmul.mubr.f32.gmra.mxu0 %v32
    %v103 = vpop.f32.mrf.mxu0
    %v104 = vadd.f32 0.0, %v103
    %v105 = vpop.f32.mrf.mxu0
    %106 = vmatprep.mubr.f32.mxu0 0.0
    %107 = vmatmul.mubr.f32.gmra.mxu0 %v35
    %v108 = vpop.f32.mrf.mxu0
    %v109 = vadd.f32 0.0, %v108
    %v110 = vpop.f32.mrf.mxu0
    %111 = vdwg.mxu0
    %v112 = vadd.f32 %v22, %v104
    %v113 = vadd.f32 %v23, %v109
    %114 = vst.msk [vmem:[#allocation2] sm:$0xff] %vm30, %v112
    %115 = vst.msk [vmem:[#allocation2 + $0x8] sm:$0xff] %vm30, %v113
    // Predicated region
    $region18: #{causal_self_attention.5} parent=1 // pred_check
      %p116 = pneg %p15
    $region19: #{causal_self_attention.5} parent=1 // pred_check_branch
      %118 = sbr.rel (%p116) target = $region21
    $region20: #{causal_self_attention.5} parent=1 // pred_region
      %v119 = vld [vmem:[#allocation2] sm:$0xff]
      %v120 = vld [vmem:[#allocation2 + $0x8] sm:$0xff]
      %v121 = vld [vmem:[%s2] sm:$0x1]
      %v123 = vlaneseq
      %v124 = vshrl.u32 %v123, 7
      %v125 = vsub.s32 0, %v124
      %v126 = vrot.slane %v121, %v125
      %v128 = vadd.f32 %v119, %v126
      %v129 = vadd.f32 %v120, %v126
      %130 = vst.msk [vmem:[#allocation3] sm:$0xff] %vm30, %v128
      %131 = vst.msk [vmem:[#allocation3 + $0x8] sm:$0xff] %vm30, %v129
    $region21: #{causal_self_attention.5} parent=1 // pred_fallthru
      _
    // Predicated region
    $region22: #{causal_self_attention.5} parent=1 // pred_check
      _
    $region23: #{causal_self_attention.5} parent=1 // pred_check_branch
      %133 = sbr.rel (0) target = $region25
    $region24: #{causal_self_attention.5} parent=1 // pred_region
      %s135 = ssub.s32 256, 256
      %136 = vsyncadd [#allocation4], %s135
      %s137 = sshll.u32 [#allocation3], 4
      %s138 = int_to_ptr.vmem [resolvable:$true] %s137
      %143 = dma.vmem_to_hbm [thread:$0]  %s138, 256, %s3, [#allocation4], 128, 128, 8
    $region25: #{causal_self_attention.5} parent=1 // pred_fallthru
      _
    // Predicated region
    $region26: #{causal_self_attention.5} parent=1 // pred_check
      _
    $region27: #{causal_self_attention.5} parent=1 // pred_check_branch
      %145 = sbr.rel (0) target = $region29
    $region28: #{causal_self_attention.5} parent=1 // pred_region
      %146 = dma.done [#allocation4], 256
    $region29: #{causal_self_attention.5} parent=1 // pred_fallthru
      _
    %147 = vsyncpa [#allocation4], 1

// kernel: causal_self_attention.3
$region0: #{causal_self_attention.3}
  #allocation0 [shape = 'u32[]', space=smem, size = 0x4, offset = 0x4, fixed_abs, tag = 'smem constant byte address 0x4 - core index']
  #allocation1 [shape = 'u32[144,128]{1,0:T(1,128)}', space=vmem, size = 0x12000, scoped, tag = 'internal scratch']
  #allocation2 [shape = 'f32[16,96]{1,0:T(8,128)}', space=vmem, size = 0x2000, scoped, tag = 'scratch operand']
  %s0 = inlined_call_operand.hbm [shape: f32[16,32], index: 0, kind: input, shape index: {}]
  %s1 = inlined_call_operand.hbm [shape: f32[32,96], index: 1, kind: input, shape index: {}]
  %s2 = inlined_call_operand.vmem [shape: f32[1,96], index: 2, kind: input, shape index: {}]
  %s3 = inlined_call_operand.vmem [shape: f32[16,96], index: 3, kind: output, shape index: {}]
  %s4 = sld [smem:[#allocation0]]
  $region38: #{causal_self_attention.3} parent=0
    _
  %s6 = ssub.s32 1, %s4
  %s7 = scalar_select 0, %s6, %s4
  $region1: #{causal_self_attention.3} parent=0
    #allocation3 [shape = 'u8[8192]{0}', space=vmem, size = 0x2000, scoped, tag = 'input window, operand 0, single buffered']
    #allocation4 [shape = 's32[1]{0}', space=sflag, size = 0x4, scoped, tag = 'scoped memory for causal_self_attention.3']
    #allocation5 [shape = 'u8[16384]{0}', space=vmem, size = 0x4000, scoped, tag = 'input window, operand 1, single buffered']
    #allocation6 [shape = 's32[1]{0}', space=sflag, size = 0x4, scoped, tag = 'scoped memory for causal_self_attention.3']
    %8 = vsyncpa [#allocation4], 0
    %9 = vsyncpa [#allocation6], 0
    // Predicated region
    $region2: #{causal_self_attention.3} parent=1 // pred_check
      _
    $region3: #{causal_self_attention.3} parent=1 // pred_check_branch
      %11 = sbr.rel (0) target = $region5
    $region4: #{causal_self_attention.3} parent=1 // pred_region
      %s13 = ssub.s32 256, 256
      %14 = vsyncadd [#allocation4], %s13
      %s15 = sshll.u32 [#allocation3], 4
      %s16 = int_to_ptr.vmem [resolvable:$true] %s15
      %21 = dma.hbm_to_vmem [thread:$0]  %s0, 256, %s16, [#allocation4], 128, 128, 8
    $region5: #{causal_self_attention.3} parent=1 // pred_fallthru
      _
    // Predicated region
    $region6: #{causal_self_attention.3} parent=1 // pred_check
      _
    $region7: #{causal_self_attention.3} parent=1 // pred_check_branch
      %23 = sbr.rel (0) target = $region9
    $region8: #{causal_self_attention.3} parent=1 // pred_region
      %s25 = ssub.s32 512, 512
      %26 = vsyncadd [#allocation6], %s25
      %s27 = sshll.u32 [#allocation5], 4
      %s28 = int_to_ptr.vmem [resolvable:$true] %s27
      %33 = dma.hbm_to_vmem [thread:$0]  %s1, 512, %s28, [#allocation6], 128, 128, 8
    $region9: #{causal_self_attention.3} parent=1 // pred_fallthru
      _
    // Predicated region
    $region10: #{causal_self_attention.3} parent=1 // pred_check
      _
    $region11: #{causal_self_attention.3} parent=1 // pred_check_branch
      %35 = sbr.rel (0) target = $region13
    $region12: #{causal_self_attention.3} parent=1 // pred_region
      _
    $region13: #{causal_self_attention.3} parent=1 // pred_fallthru
      _
    // Predicated region
    $region14: #{causal_self_attention.3} parent=1 // pred_check
      _
    $region15: #{causal_self_attention.3} parent=1 // pred_check_branch
      %37 = sbr.rel (0) target = $region17
    $region16: #{causal_self_attention.3} parent=1 // pred_region
      %38 = dma.done [#allocation4], 256
    $region17: #{causal_self_attention.3} parent=1 // pred_fallthru
      _
    // Predicated region
    $region18: #{causal_self_attention.3} parent=1 // pred_check
      _
    $region19: #{causal_self_attention.3} parent=1 // pred_check_branch
      %40 = sbr.rel (0) target = $region21
    $region20: #{causal_self_attention.3} parent=1 // pred_region
      %41 = dma.done [#allocation6], 512
    $region21: #{causal_self_attention.3} parent=1 // pred_fallthru
      _
    %p42 = scmp.eq.s32.totalorder 0, 0
    // Predicated region
    $region22: #{causal_self_attention.3} parent=1 // pred_check
      %p43 = pneg %p42
    $region23: #{causal_self_attention.3} parent=1 // pred_check_branch
      %45 = sbr.rel (%p43) target = $region25
    $region24: #{causal_self_attention.3} parent=1 // pred_region
      %vm46 = vcmask 785408
      %47 = vst.msk [vmem:[#allocation2] sm:$0xff] %vm46, 0.0
      %48 = vst.msk [vmem:[#allocation2 + $0x8] sm:$0xff] %vm46, 0.0
    $region25: #{causal_self_attention.3} parent=1 // pred_fallthru
      _
    %v49 = vld [vmem:[#allocation2] sm:$0xff]
    %v50 = vld [vmem:[#allocation2 + $0x8] sm:$0xff]
    %v51 = vld [vmem:[#allocation3] sm:$0xff]
    %v52 = vld [vmem:[#allocation3 + $0x8] sm:$0xff]
    %v53 = vld [vmem:[#allocation5] sm:$0xff]
    %v54 = vld [vmem:[#allocation5 + $0x8] sm:$0xff]
    %v55 = vld [vmem:[#allocation5 + $0x10] sm:$0xff]
    %v56 = vld [vmem:[#allocation5 + $0x18] sm:$0xff]
    %vm57 = vcmask 261120
    %v59 = vsel %vm57, %v51, 0
    %v62 = vsel %vm57, %v52, 0
    %64 = vmatprep.subr.mxu0 0.0
    %65 = vmatpush1.msra.mxu0 0.0
    %66 = vmatprep.subr.mxu0 0.0
    %67 = vmatpush1.msra.mxu0 0.0
    %68 = vmatprep.subr.mxu0 0.0
    %69 = vmatpush1.msra.mxu0 0.0
    %70 = vmatprep.subr.mxu0 0.0
    %71 = vmatpush1.msra.mxu0 0.0
    %72 = vmatprep.subr.mxu0 0.0
    %73 = vmatpush1.msra.mxu0 0.0
    %74 = vmatprep.subr.mxu0 0.0
    %75 = vmatpush1.msra.mxu0 0.0
    %76 = vmatprep.subr.mxu0 0.0
    %77 = vmatpush1.msra.mxu0 0.0
    %78 = vmatprep.subr.mxu0 0.0
    %79 = vmatpush1.msra.mxu0 0.0
    %80 = vmatprep.subr.mxu0 0.0
    %81 = vmatpush1.msra.mxu0 0.0
    %82 = vmatprep.subr.mxu0 0.0
    %83 = vmatpush1.msra.mxu0 0.0
    %84 = vmatprep.subr.mxu0 0.0
    %85 = vmatpush1.msra.mxu0 0.0
    %86 = vmatprep.subr.mxu0 0.0
    %87 = vmatpush1.msra.mxu0 0.0
    %88 = vmatprep.subr.mxu0 0.0
    %89 = vmatpush1.msra.mxu0 %v56
    %90 = vmatprep.subr.mxu0 0.0
    %91 = vmatpush1.msra.mxu0 %v55
    %92 = vmatprep.subr.mxu0 0.0
    %93 = vmatpush1.msra.mxu0 %v54
    %94 = vmatprep.subr.mxu0 0.0
    %95 = vmatpush1.msra.mxu0 %v53
    %96 = vmatprep.subr.mxu0 0.0
    %97 = vmatpush2.msra.mxu0 0.0
    %98 = vmatprep.subr.mxu0 0.0
    %99 = vmatpush2.msra.mxu0 0.0
    %100 = vmatprep.subr.mxu0 0.0
    %101 = vmatpush2.msra.mxu0 0.0
    %102 = vmatprep.subr.mxu0 0.0
    %103 = vmatpush2.msra.mxu0 0.0
    %104 = vmatprep.subr.mxu0 0.0
    %105 = vmatpush2.msra.mxu0 0.0
    %106 = vmatprep.subr.mxu0 0.0
    %107 = vmatpush2.msra.mxu0 0.0
    %108 = vmatprep.subr.mxu0 0.0
    %109 = vmatpush2.msra.mxu0 0.0
    %110 = vmatprep.subr.mxu0 0.0
    %111 = vmatpush2.msra.mxu0 0.0
    %112 = vmatprep.subr.mxu0 0.0
    %113 = vmatpush2.msra.mxu0 0.0
    %114 = vmatprep.subr.mxu0 0.0
    %115 = vmatpush2.msra.mxu0 0.0
    %116 = vmatprep.subr.mxu0 0.0
    %117 = vmatpush2.msra.mxu0 0.0
    %118 = vmatprep.subr.mxu0 0.0
    %119 = vmatpush2.msra.mxu0 0.0
    %120 = vmatprep.subr.mxu0 0.0
    %121 = vmatpush2.msra.mxu0 0.0
    %122 = vmatprep.subr.mxu0 0.0
    %123 = vmatpush2.msra.mxu0 0.0
    %124 = vmatprep.subr.mxu0 0.0
    %125 = vmatpush2.msra.mxu0 0.0
    %126 = vmatprep.subr.mxu0 0.0
    %127 = vmatpush2.msra.mxu0 0.0
    %128 = vmatprep.mubr.f32.mxu0 0.0
    %129 = vmatmul.mubr.f32.gmra.mxu0 %v59
    %v130 = vpop.f32.mrf.mxu0
    %v131 = vadd.f32 0.0, %v130
    %v132 = vpop.f32.mrf.mxu0
    %133 = vmatprep.mubr.f32.mxu0 0.0
    %134 = vmatmul.mubr.f32.gmra.mxu0 %v62
    %v135 = vpop.f32.mrf.mxu0
    %v136 = vadd.f32 0.0, %v135
    %v137 = vpop.f32.mrf.mxu0
    %138 = vdwg.mxu0
    %v139 = vadd.f32 %v49, %v131
    %v140 = vadd.f32 %v50, %v136
    %vm141 = vcmask 785408
    %142 = vst.msk [vmem:[#allocation2] sm:$0xff] %vm141, %v139
    %143 = vst.msk [vmem:[#allocation2 + $0x8] sm:$0xff] %vm141, %v140
    // Predicated region
    $region26: #{causal_self_attention.3} parent=1 // pred_check
      %p144 = pneg %p42
    $region27: #{causal_self_attention.3} parent=1 // pred_check_branch
      %146 = sbr.rel (%p144) target = $region29
    $region28: #{causal_self_attention.3} parent=1 // pred_region
      %v147 = vld [vmem:[#allocation2] sm:$0xff]
      %v148 = vld [vmem:[#allocation2 + $0x8] sm:$0xff]
      %v149 = vld [vmem:[%s2] sm:$0x1]
      %v151 = vlaneseq
      %v152 = vshrl.u32 %v151, 7
      %v153 = vsub.s32 0, %v152
      %v154 = vrot.slane %v149, %v153
      %v156 = vadd.f32 %v147, %v154
      %v157 = vadd.f32 %v148, %v154
      %158 = vst.msk [vmem:[%s3] sm:$0xff] %vm141, %v156
      %159 = vst.msk [vmem:[%s3 + $0x8] sm:$0xff] %vm141, %v157
    $region29: #{causal_self_attention.3} parent=1 // pred_fallthru
      _
    // Predicated region
    $region30: #{causal_self_attention.3} parent=1 // pred_check
      _
    $region31: #{causal_self_attention.3} parent=1 // pred_check_branch
      %161 = sbr.rel (0) target = $region33
    $region32: #{causal_self_attention.3} parent=1 // pred_region
      _
    $region33: #{causal_self_attention.3} parent=1 // pred_fallthru
      _
    // Predicated region
    $region34: #{causal_self_attention.3} parent=1 // pred_check
      _
    $region35: #{causal_self_attention.3} parent=1 // pred_check_branch
      %163 = sbr.rel (0) target = $region37
    $region36: #{causal_self_attention.3} parent=1 // pred_region
      _
    $region37: #{causal_self_attention.3} parent=1 // pred_fallthru
      _
    %164 = vsyncpa [#allocation4], 1
    %165 = vsyncpa [#allocation6], 1

// kernel: causal_self_attention.4
$region0: #{causal_self_attention.4}
  #allocation0 [shape = 'u32[]', space=smem, size = 0x4, offset = 0x4, fixed_abs, tag = 'smem constant byte address 0x4 - core index']
  #allocation1 [shape = 'u32[144,128]{1,0:T(1,128)}', space=vmem, size = 0x12000, scoped, tag = 'internal scratch']
  #allocation2 [shape = 'f32[4,8,1]{2,1,0:T(8,128)}', space=vmem, size = 0x4000, scoped, tag = 'scratch operand']
  #allocation3 [shape = 'f32[4,8,1]{2,1,0:T(8,128)}', space=vmem, size = 0x4000, scoped, tag = 'scratch operand']
  #allocation4 [shape = 'f32[4,8,8]{2,1,0:T(8,128)}', space=vmem, size = 0x4000, scoped, tag = 'scratch operand']
  %s0 = inlined_call_operand.vmem [shape: f32[8,8], index: 0, kind: input, shape index: {}]
  %s1 = inlined_call_operand.vmem [shape: f32[2,4,8,8], index: 1, kind: input, shape index: {}]
  %s2 = inlined_call_operand.vmem [shape: f32[2,4,8,8], index: 2, kind: input, shape index: {}]
  %s3 = inlined_call_operand.vmem [shape: f32[2,4,8,8], index: 3, kind: input, shape index: {}]
  %s4 = inlined_call_operand.vmem [shape: f32[2,4,8,8], index: 4, kind: output, shape index: {}]
  %s5 = sld [smem:[#allocation0]]
  $region57: #{causal_self_attention.4} parent=0
    _
  %s7 = ssub.s32 1, %s5
  %s8 = scalar_select 0, %s7, %s5
  loop: start=0, step=1, limit=4
  $region2: #{causal_self_attention.4} parent=0 // loop_pre_header
    _
  $region3: #{causal_self_attention.4} parent=0 // loop_header
    %s10 = sphi 0, %s14
    %p11 = scmp.ge.s32.totalorder %s10, 4
    %s17 = sphi 0, %s36
    %s18 = sphi 0, %s32
    %s19 = sphi 0, %s28
    %s20 = sphi 0, %s17
    %s21 = sphi 0, %s18
    %s22 = sphi 0, %s19
    %s23 = sphi 0, %s20
    %s24 = sphi 0, %s21
    %s25 = sphi 0, %s22
    %s41 = sphi 0, %s43
    %s44 = sphi 0, %s41
    %s45 = sphi 0, %s44
    %s61 = sphi 0, %s45
    %s69 = sphi 0, %s71
    %s72 = sphi 0, %s69
    %s73 = sphi 0, %s72
    %s89 = sphi 0, %s73
    %s97 = sphi 0, %s99
    %s100 = sphi 0, %s97
    %s101 = sphi 0, %s100
    %s117 = sphi 0, %s101
    %s125 = sphi 0, %s127
    %s128 = sphi 0, %s125
    %s129 = sphi 0, %s128
    %s145 = sphi 0, %s129
    %s153 = sphi 0, %s155
    %s156 = sphi 0, %s153
    %s157 = sphi 0, %s156
    %s173 = sphi 0, %s157
  $region4: #{causal_self_attention.4} parent=0 // loop_header_branch
    %13 = sbr.rel (%p11) target = $region8
  $region5: #{causal_self_attention.4} parent=0 // loop_body
    %s15 = ssub.s32 %s10, 1
    %s16 = ssub.s32 %s10, 2
    %s26 = sadd.s32 1, %s19
    %p27 = scmp.ge.s32.totalorder %s26, 1
    %s28 = scalar_select %p27, 0, %s26
    %s29 = sadd.s32 1, %s18
    %s30 = scalar_select %p27, %s29, %s18
    %p31 = scmp.ge.s32.totalorder %s30, 1
    %s32 = scalar_select %p31, 0, %s30
    %s33 = sadd.s32 1, %s17
    %s34 = scalar_select %p31, %s33, %s17
    %p35 = scmp.ge.s32.totalorder %s34, 2
    %s36 = scalar_select %p35, 0, %s34
    %s37 = ssub.s32 %s18, %s32
    %s38 = ssub.s32 %s19, %s28
    %s39 = sor.u32 %s37, %s38
    %p40 = scmp.eq.s32.totalorder %s39, 0
    %s42 = sadd.s32 %s41, 1
    %s43 = scalar_select %p40, %s41, %s42
    %p46 = pneg %p40
    %p47 = scmp.eq.s32.totalorder %s10, 1
    %p48 = por %p46, %p47
    %p49 = scmp.ne.s32.totalorder %s41, %s44
    %p50 = scmp.eq.s32.totalorder %s10, 0
    %p51 = por %p49, %p50
    %p52 = scmp.ne.s32.totalorder %s41, %s44
    %p53 = scmp.eq.s32.totalorder %s15, 1
    %p54 = por %p52, %p53
    %p55 = scmp.ne.s32.totalorder %s44, %s45
    %p56 = scmp.eq.s32.totalorder %s15, 0
    %p57 = por %p55, %p56
    %p58 = scmp.ne.s32.totalorder %s44, %s45
    %p59 = scmp.eq.s32.totalorder %s16, 1
    %p60 = por %p58, %p59
    %p62 = scmp.ne.s32.totalorder %s45, %s61
    %p63 = scmp.eq.s32.totalorder %s16, 0
    %p64 = por %p62, %p63
    %s65 = ssub.s32 %s17, %s36
    %s66 = ssub.s32 %s18, %s32
    %s67 = sor.u32 %s65, %s66
    %p68 = scmp.eq.s32.totalorder %s67, 0
    %s70 = sadd.s32 %s69, 1
    %s71 = scalar_select %p68, %s69, %s70
    %p74 = pneg %p68
    %p75 = scmp.eq.s32.totalorder %s10, 1
    %p76 = por %p74, %p75
    %p77 = scmp.ne.s32.totalorder %s69, %s72
    %p78 = scmp.eq.s32.totalorder %s10, 0
    %p79 = por %p77, %p78
    %p80 = scmp.ne.s32.totalorder %s69, %s72
    %p81 = scmp.eq.s32.totalorder %s15, 1
    %p82 = por %p80, %p81
    %p83 = scmp.ne.s32.totalorder %s72, %s73
    %p84 = scmp.eq.s32.totalorder %s15, 0
    %p85 = por %p83, %p84
    %p86 = scmp.ne.s32.totalorder %s72, %s73
    %p87 = scmp.eq.s32.totalorder %s16, 1
    %p88 = por %p86, %p87
    %p90 = scmp.ne.s32.totalorder %s73, %s89
    %p91 = scmp.eq.s32.totalorder %s16, 0
    %p92 = por %p90, %p91
    %s93 = ssub.s32 %s17, %s36
    %s94 = ssub.s32 %s19, %s28
    %s95 = sor.u32 %s93, %s94
    %p96 = scmp.eq.s32.totalorder %s95, 0
    %s98 = sadd.s32 %s97, 1
    %s99 = scalar_select %p96, %s97, %s98
    %p102 = pneg %p96
    %p103 = scmp.eq.s32.totalorder %s10, 1
    %p104 = por %p102, %p103
    %p105 = scmp.ne.s32.totalorder %s97, %s100
    %p106 = scmp.eq.s32.totalorder %s10, 0
    %p107 = por %p105, %p106
    %p108 = scmp.ne.s32.totalorder %s97, %s100
    %p109 = scmp.eq.s32.totalorder %s15, 1
    %p110 = por %p108, %p109
    %p111 = scmp.ne.s32.totalorder %s100, %s101
    %p112 = scmp.eq.s32.totalorder %s15, 0
    %p113 = por %p111, %p112
    %p114 = scmp.ne.s32.totalorder %s100, %s101
    %p115 = scmp.eq.s32.totalorder %s16, 1
    %p116 = por %p114, %p115
    %p118 = scmp.ne.s32.totalorder %s101, %s117
    %p119 = scmp.eq.s32.totalorder %s16, 0
    %p120 = por %p118, %p119
    %s121 = ssub.s32 %s17, %s36
    %s122 = ssub.s32 %s19, %s28
    %s123 = sor.u32 %s121, %s122
    %p124 = scmp.eq.s32.totalorder %s123, 0
    %s126 = sadd.s32 %s125, 1
    %s127 = scalar_select %p124, %s125, %s126
    %p130 = pneg %p124
    %p131 = scmp.eq.s32.totalorder %s10, 1
    %p132 = por %p130, %p131
    %p133 = scmp.ne.s32.totalorder %s125, %s128
    %p134 = scmp.eq.s32.totalorder %s10, 0
    %p135 = por %p133, %p134
    %p136 = scmp.ne.s32.totalorder %s125, %s128
    %p137 = scmp.eq.s32.totalorder %s15, 1
    %p138 = por %p136, %p137
    %p139 = scmp.ne.s32.totalorder %s128, %s129
    %p140 = scmp.eq.s32.totalorder %s15, 0
    %p141 = por %p139, %p140
    %p142 = scmp.ne.s32.totalorder %s128, %s129
    %p143 = scmp.eq.s32.totalorder %s16, 1
    %p144 = por %p142, %p143
    %p146 = scmp.ne.s32.totalorder %s129, %s145
    %p147 = scmp.eq.s32.totalorder %s16, 0
    %p148 = por %p146, %p147
    %s149 = ssub.s32 %s17, %s36
    %s150 = ssub.s32 %s18, %s32
    %s151 = sor.u32 %s149, %s150
    %p152 = scmp.eq.s32.totalorder %s151, 0
    %s154 = sadd.s32 %s153, 1
    %s155 = scalar_select %p152, %s153, %s154
    %p158 = pneg %p152
    %p159 = scmp.eq.s32.totalorder %s10, 1
    %p160 = por %p158, %p159
    %p161 = scmp.ne.s32.totalorder %s153, %s156
    %p162 = scmp.eq.s32.totalorder %s10, 0
    %p163 = por %p161, %p162
    %p164 = scmp.ne.s32.totalorder %s153, %s156
    %p165 = scmp.eq.s32.totalorder %s15, 1
    %p166 = por %p164, %p165
    %p167 = scmp.ne.s32.totalorder %s156, %s157
    %p168 = scmp.eq.s32.totalorder %s15, 0
    %p169 = por %p167, %p168
    %p170 = scmp.ne.s32.totalorder %s156, %s157
    %p171 = scmp.eq.s32.totalorder %s16, 1
    %p172 = por %p170, %p171
    %p174 = scmp.ne.s32.totalorder %s157, %s173
    %p175 = scmp.eq.s32.totalorder %s16, 0
    %p176 = por %p174, %p175
    %p177 = scmp.le.s32.totalorder 1, %s10
    %p178 = scmp.lt.s32.totalorder %s10, 3
    %p179 = pnand %p177, %p178
    %p180 = pneg %p179
    // Predicated region
    $region9: #{causal_self_attention.4} parent=5 // pred_check
      _
    $region10: #{causal_self_attention.4} parent=5 // pred_check_branch
      %182 = sbr.rel (%p179) target = $region12
    $region11: #{causal_self_attention.4} parent=5 // pred_region
      %s183 = ssub.s32 %s10, 1
      // Predicated region
      $region13: #{causal_self_attention.4} parent=11 // pred_check
        %p184 = pneg %p57
      $region14: #{causal_self_attention.4} parent=11 // pred_check_branch
        %186 = sbr.rel (%p184) target = $region16
      $region15: #{causal_self_attention.4} parent=11 // pred_region
        %p187 = scmp.lt.s32.totalorder %s21, 0
        %s188 = scalar_select %p187, %s21, 0
        %p189 = scmp.lt.s32.totalorder %s22, 0
        %s190 = scalar_select %p189, %s22, 0
        %s191 = sadd.s32 %s190, %s188
        %s192 = smul.addr %s191, 8
        %s193 = scalar_lea.vmem %s0, %s192
      $region16: #{causal_self_attention.4} parent=11 // pred_fallthru
        _
    $region12: #{causal_self_attention.4} parent=5 // pred_fallthru
      _
    %p194 = scmp.lt.s32.totalorder %s10, 2
    // Predicated region
    $region17: #{causal_self_attention.4} parent=5 // pred_check
      %p195 = pneg %p194
    $region18: #{causal_self_attention.4} parent=5 // pred_check_branch
      %197 = sbr.rel (%p195) target = $region20
    $region19: #{causal_self_attention.4} parent=5 // pred_region
      // Predicated region
      $region21: #{causal_self_attention.4} parent=19 // pred_check
        %p198 = pneg %p79
      $region22: #{causal_self_attention.4} parent=19 // pred_check_branch
        %200 = sbr.rel (%p198) target = $region24
      $region23: #{causal_self_attention.4} parent=19 // pred_region
        %p201 = scmp.lt.s32.totalorder %s17, 1
        %s202 = scalar_select %p201, %s17, 1
        %p203 = scmp.lt.s32.totalorder %s18, 0
        %s204 = scalar_select %p203, %s18, 0
        %s205 = smul.addr %s202, 4
        %s206 = sadd.s32 %s204, %s205
        %s207 = smul.addr %s206, 8
        %s208 = scalar_lea.vmem %s1, %s207
      $region24: #{causal_self_attention.4} parent=19 // pred_fallthru
        _
      // Predicated region
      $region25: #{causal_self_attention.4} parent=19 // pred_check
        %p209 = pneg %p107
      $region26: #{causal_self_attention.4} parent=19 // pred_check_branch
        %211 = sbr.rel (%p209) target = $region28
      $region27: #{causal_self_attention.4} parent=19 // pred_region
        %p212 = scmp.lt.s32.totalorder %s17, 1
        %s213 = scalar_select %p212, %s17, 1
        %p214 = scmp.lt.s32.totalorder %s19, 0
        %s215 = scalar_select %p214, %s19, 0
        %s216 = smul.addr %s213, 4
        %s217 = sadd.s32 %s215, %s216
        %s218 = smul.addr %s217, 8
        %s219 = scalar_lea.vmem %s2, %s218
      $region28: #{causal_self_attention.4} parent=19 // pred_fallthru
        _
      // Predicated region
      $region29: #{causal_self_attention.4} parent=19 // pred_check
        %p220 = pneg %p135
      $region30: #{causal_self_attention.4} parent=19 // pred_check_branch
        %222 = sbr.rel (%p220) target = $region32
      $region31: #{causal_self_attention.4} parent=19 // pred_region
        %p223 = scmp.lt.s32.totalorder %s17, 1
        %s224 = scalar_select %p223, %s17, 1
        %p225 = scmp.lt.s32.totalorder %s19, 0
        %s226 = scalar_select %p225, %s19, 0
        %s227 = smul.addr %s224, 4
        %s228 = sadd.s32 %s226, %s227
        %s229 = smul.addr %s228, 8
        %s230 = scalar_lea.vmem %s3, %s229
      $region32: #{causal_self_attention.4} parent=19 // pred_fallthru
        _
    $region20: #{causal_self_attention.4} parent=5 // pred_fallthru
      _
    %p231 = scmp.le.s32.totalorder 1, %s10
    %p232 = scmp.lt.s32.totalorder %s10, 3
    %p233 = pnand %p231, %p232
    %p234 = pneg %p233
    // Predicated region
    $region33: #{causal_self_attention.4} parent=5 // pred_check
      _
    $region34: #{causal_self_attention.4} parent=5 // pred_check_branch
      %236 = sbr.rel (%p233) target = $region36
    $region35: #{causal_self_attention.4} parent=5 // pred_region
      %s237 = ssub.s32 %s10, 1
      %p238 = scmp.lt.s32.totalorder %s21, 0
      %s239 = scalar_select %p238, %s21, 0
      %p240 = scmp.lt.s32.totalorder %s22, 0
      %s241 = scalar_select %p240, %s22, 0
      %s242 = sadd.s32 %s241, %s239
      %s243 = smul.addr %s242, 8
      %s244 = scalar_lea.vmem %s0, %s243
      %p245 = pneg %p57
      %p246 = pneg %p54
      %p247 = scmp.lt.s32.totalorder %s20, 1
      %s248 = scalar_select %p247, %s20, 1
      %p249 = scmp.lt.s32.totalorder %s21, 0
      %s250 = scalar_select %p249, %s21, 0
      %s251 = smul.addr %s248, 4
      %s252 = sadd.s32 %s250, %s251
      %s253 = smul.addr %s252, 8
      %s254 = scalar_lea.vmem %s1, %s253
      %p255 = pneg %p85
      %p256 = pneg %p82
      %p257 = scmp.lt.s32.totalorder %s20, 1
      %s258 = scalar_select %p257, %s20, 1
      %p259 = scmp.lt.s32.totalorder %s22, 0
      %s260 = scalar_select %p259, %s22, 0
      %s261 = smul.addr %s258, 4
      %s262 = sadd.s32 %s260, %s261
      %s263 = smul.addr %s262, 8
      %s264 = scalar_lea.vmem %s2, %s263
      %p265 = pneg %p113
      %p266 = pneg %p110
      %p267 = scmp.lt.s32.totalorder %s20, 1
      %s268 = scalar_select %p267, %s20, 1
      %p269 = scmp.lt.s32.totalorder %s22, 0
      %s270 = scalar_select %p269, %s22, 0
      %s271 = smul.addr %s268, 4
      %s272 = sadd.s32 %s270, %s271
      %s273 = smul.addr %s272, 8
      %s274 = scalar_lea.vmem %s3, %s273
      %p275 = pneg %p141
      %p276 = pneg %p138
      %p277 = pneg %p169
      %p278 = pneg %p166
      %p279 = scmp.lt.s32.totalorder %s20, 1
      %s280 = scalar_select %p279, %s20, 1
      %p281 = scmp.lt.s32.totalorder %s21, 0
      %s282 = scalar_select %p281, %s21, 0
      %s283 = smul.addr %s280, 4
      %s284 = sadd.s32 %s282, %s283
      %s285 = smul.addr %s284, 8
      %s286 = scalar_lea.vmem %s4, %s285
      %p287 = scmp.lt.s32.totalorder %s21, 0
      %s288 = scalar_select %p287, %s21, 0
      %p289 = scmp.lt.s32.totalorder %s22, 0
      %s290 = scalar_select %p289, %s22, 0
      %s291 = sadd.s32 %s290, %s288
      %s292 = smul.addr %s291, 8
      %s293 = scalar_lea.vmem %s0, %s292
      %p294 = scmp.lt.s32.totalorder %s20, 1
      %s295 = scalar_select %p294, %s20, 1
      %p296 = scmp.lt.s32.totalorder %s21, 0
      %s297 = scalar_select %p296, %s21, 0
      %s298 = smul.addr %s295, 4
      %s299 = sadd.s32 %s297, %s298
      %s300 = smul.addr %s299, 8
      %s301 = scalar_lea.vmem %s1, %s300
      %p302 = scmp.lt.s32.totalorder %s20, 1
      %s303 = scalar_select %p302, %s20, 1
      %p304 = scmp.lt.s32.totalorder %s22, 0
      %s305 = scalar_select %p304, %s22, 0
      %s306 = smul.addr %s303, 4
      %s307 = sadd.s32 %s305, %s306
      %s308 = smul.addr %s307, 8
      %s309 = scalar_lea.vmem %s2, %s308
      %p310 = scmp.lt.s32.totalorder %s20, 1
      %s311 = scalar_select %p310, %s20, 1
      %p312 = scmp.lt.s32.totalorder %s22, 0
      %s313 = scalar_select %p312, %s22, 0
      %s314 = smul.addr %s311, 4
      %s315 = sadd.s32 %s313, %s314
      %s316 = smul.addr %s315, 8
      %s317 = scalar_lea.vmem %s3, %s316
      %p318 = scmp.lt.s32.totalorder %s20, 1
      %s319 = scalar_select %p318, %s20, 1
      %p320 = scmp.lt.s32.totalorder %s21, 0
      %s321 = scalar_select %p320, %s21, 0
      %s322 = smul.addr %s319, 4
      %s323 = sadd.s32 %s321, %s322
      %s324 = smul.addr %s323, 8
      %s325 = scalar_lea.vmem %s4, %s324
      %p326 = scmp.eq.s32.totalorder %s22, 0
      // Predicated region
      $region37: #{causal_self_attention.4} parent=35 // pred_check
        %p327 = pneg %p326
      $region38: #{causal_self_attention.4} parent=35 // pred_check_branch
        %329 = sbr.rel (%p327) target = $region40
      $region39: #{causal_self_attention.4} parent=35 // pred_region
        %vm330 = vcmask 7168
        %331 = vst.msk [vmem:[#allocation2] sm:$0xff] %vm330, -inf
        %332 = vst.msk [vmem:[#allocation2 + $0x8] sm:$0xff] %vm330, -inf
        %333 = vst.msk [vmem:[#allocation2 + $0x10] sm:$0xff] %vm330, -inf
        %334 = vst.msk [vmem:[#allocation2 + $0x18] sm:$0xff] %vm330, -inf
        %335 = vst.msk [vmem:[#allocation3] sm:$0xff] %vm330, 0.0
        %336 = vst.msk [vmem:[#allocation3 + $0x8] sm:$0xff] %vm330, 0.0
        %337 = vst.msk [vmem:[#allocation3 + $0x10] sm:$0xff] %vm330, 0.0
        %338 = vst.msk [vmem:[#allocation3 + $0x18] sm:$0xff] %vm330, 0.0
        %vm339 = vcmask 64512
        %340 = vst.msk [vmem:[#allocation4] sm:$0xff] %vm339, 0.0
        %341 = vst.msk [vmem:[#allocation4 + $0x8] sm:$0xff] %vm339, 0.0
        %342 = vst.msk [vmem:[#allocation4 + $0x10] sm:$0xff] %vm339, 0.0
        %343 = vst.msk [vmem:[#allocation4 + $0x18] sm:$0xff] %vm339, 0.0
      $region40: #{causal_self_attention.4} parent=35 // pred_fallthru
        _
      %v344 = vld [vmem:[%s301] sm:$0xff]
      %v345 = vld [vmem:[%s301 + $0x8] sm:$0xff]
      %v346 = vld [vmem:[%s301 + $0x10] sm:$0xff]
      %v347 = vld [vmem:[%s301 + $0x18] sm:$0xff]
      %v348 = vmul.f32 %v344, 0.35355338
      %v349 = vmul.f32 %v345, 0.35355338
      %v350 = vmul.f32 %v346, 0.35355338
      %v351 = vmul.f32 %v347, 0.35355338
      %v352 = vld [vmem:[%s309] sm:$0xff]
      %v353 = vld [vmem:[%s309 + $0x8] sm:$0xff]
      %v354 = vld [vmem:[%s309 + $0x10] sm:$0xff]
      %v355 = vld [vmem:[%s309 + $0x18] sm:$0xff]
      %vm356 = vcmask 64512
      %v358 = vsel %vm356, %v348, 0
      %v361 = vsel %vm356, %v352, 0
      %363 = vmatprep.subr.mxu0 0.0
      %364 = vmatpush1.xpose.msra.mxu0 0.0
      %365 = vmatprep.subr.mxu0 0.0
      %366 = vmatpush1.xpose.msra.mxu0 0.0
      %367 = vmatprep.subr.mxu0 0.0
      %368 = vmatpush1.xpose.msra.mxu0 0.0
      %369 = vmatprep.subr.mxu0 0.0
      %370 = vmatpush1.xpose.msra.mxu0 0.0
      %371 = vmatprep.subr.mxu0 0.0
      %372 = vmatpush1.xpose.msra.mxu0 0.0
      %373 = vmatprep.subr.mxu0 0.0
      %374 = vmatpush1.xpose.msra.mxu0 0.0
      %375 = vmatprep.subr.mxu0 0.0
      %376 = vmatpush1.xpose.msra.mxu0 0.0
      %377 = vmatprep.subr.mxu0 0.0
      %378 = vmatpush1.xpose.msra.mxu0 0.0
      %379 = vmatprep.subr.mxu0 0.0
      %380 = vmatpush1.xpose.msra.mxu0 0.0
      %381 = vmatprep.subr.mxu0 0.0
      %382 = vmatpush1.xpose.msra.mxu0 0.0
      %383 = vmatprep.subr.mxu0 0.0
      %384 = vmatpush1.xpose.msra.mxu0 0.0
      %385 = vmatprep.subr.mxu0 0.0
      %386 = vmatpush1.xpose.msra.mxu0 0.0
      %387 = vmatprep.subr.mxu0 0.0
      %388 = vmatpush1.xpose.msra.mxu0 0.0
      %389 = vmatprep.subr.mxu0 0.0
      %390 = vmatpush1.xpose.msra.mxu0 0.0
      %391 = vmatprep.subr.mxu0 0.0
      %392 = vmatpush1.xpose.msra.mxu0 0.0
      %393 = vmatprep.subr.mxu0 0.0
      %394 = vmatpush1.xpose.msra.mxu0 %v361
      %395 = vmatprep.subr.mxu0 0.0
      %396 = vmatpush2.xpose.msra.mxu0 0.0
      %397 = vmatprep.subr.mxu0 0.0
      %398 = vmatpush2.xpose.msra.mxu0 0.0
      %399 = vmatprep.subr.mxu0 0.0
      %400 = vmatpush2.xpose.msra.mxu0 0.0
      %401 = vmatprep.subr.mxu0 0.0
      %402 = vmatpush2.xpose.msra.mxu0 0.0
      %403 = vmatprep.subr.mxu0 0.0
      %404 = vmatpush2.xpose.msra.mxu0 0.0
      %405 = vmatprep.subr.mxu0 0.0
      %406 = vmatpush2.xpose.msra.mxu0 0.0
      %407 = vmatprep.subr.mxu0 0.0
      %408 = vmatpush2.xpose.msra.mxu0 0.0
      %409 = vmatprep.subr.mxu0 0.0
      %410 = vmatpush2.xpose.msra.mxu0 0.0
      %411 = vmatprep.subr.mxu0 0.0
      %412 = vmatpush2.xpose.msra.mxu0 0.0
      %413 = vmatprep.subr.mxu0 0.0
      %414 = vmatpush2.xpose.msra.mxu0 0.0
      %415 = vmatprep.subr.mxu0 0.0
      %416 = vmatpush2.xpose.msra.mxu0 0.0
      %417 = vmatprep.subr.mxu0 0.0
      %418 = vmatpush2.xpose.msra.mxu0 0.0
      %419 = vmatprep.subr.mxu0 0.0
      %420 = vmatpush2.xpose.msra.mxu0 0.0
      %421 = vmatprep.subr.mxu0 0.0
      %422 = vmatpush2.xpose.msra.mxu0 0.0
      %423 = vmatprep.subr.mxu0 0.0
      %424 = vmatpush2.xpose.msra.mxu0 0.0
      %425 = vmatprep.subr.mxu0 0.0
      %426 = vmatpush2.xpose.msra.mxu0 0.0
      %427 = vmatprep.mubr.f32.mxu0 0.0
      %428 = vmatmul.mubr.f32.gmra.mxu0 %v358
      %v429 = vpop.f32.mrf.mxu0
      %v430 = vadd.f32 0.0, %v429
      %v431 = vpop.f32.mrf.mxu0
      %432 = vdwg.mxu0
      %v434 = vsel %vm356, %v349, 0
      %v437 = vsel %vm356, %v353, 0
      %439 = vmatprep.subr.mxu0 0.0
      %440 = vmatpush1.xpose.msra.mxu0 0.0
      %441 = vmatprep.subr.mxu0 0.0
      %442 = vmatpush1.xpose.msra.mxu0 0.0
      %443 = vmatprep.subr.mxu0 0.0
      %444 = vmatpush1.xpose.msra.mxu0 0.0
      %445 = vmatprep.subr.mxu0 0.0
      %446 = vmatpush1.xpose.msra.mxu0 0.0
      %447 = vmatprep.subr.mxu0 0.0
      %448 = vmatpush1.xpose.msra.mxu0 0.0
      %449 = vmatprep.subr.mxu0 0.0
      %450 = vmatpush1.xpose.msra.mxu0 0.0
      %451 = vmatprep.subr.mxu0 0.0
      %452 = vmatpush1.xpose.msra.mxu0 0.0
      %453 = vmatprep.subr.mxu0 0.0
      %454 = vmatpush1.xpose.msra.mxu0 0.0
      %455 = vmatprep.subr.mxu0 0.0
      %456 = vmatpush1.xpose.msra.mxu0 0.0
      %457 = vmatprep.subr.mxu0 0.0
      %458 = vmatpush1.xpose.msra.mxu0 0.0
      %459 = vmatprep.subr.mxu0 0.0
      %460 = vmatpush1.xpose.msra.mxu0 0.0
      %461 = vmatprep.subr.mxu0 0.0
      %462 = vmatpush1.xpose.msra.mxu0 0.0
      %463 = vmatprep.subr.mxu0 0.0
      %464 = vmatpush1.xpose.msra.mxu0 0.0
      %465 = vmatprep.subr.mxu0 0.0
      %466 = vmatpush1.xpose.msra.mxu0 0.0
      %467 = vmatprep.subr.mxu0 0.0
      %468 = vmatpush1.xpose.msra.mxu0 0.0
      %469 = vmatprep.subr.mxu0 0.0
      %470 = vmatpush1.xpose.msra.mxu0 %v437
      %471 = vmatprep.subr.mxu0 0.0
      %472 = vmatpush2.xpose.msra.mxu0 0.0
      %473 = vmatprep.subr.mxu0 0.0
      %474 = vmatpush2.xpose.msra.mxu0 0.0
      %475 = vmatprep.subr.mxu0 0.0
      %476 = vmatpush2.xpose.msra.mxu0 0.0
      %477 = vmatprep.subr.mxu0 0.0
      %478 = vmatpush2.xpose.msra.mxu0 0.0
      %479 = vmatprep.subr.mxu0 0.0
      %480 = vmatpush2.xpose.msra.mxu0 0.0
      %481 = vmatprep.subr.mxu0 0.0
      %482 = vmatpush2.xpose.msra.mxu0 0.0
      %483 = vmatprep.subr.mxu0 0.0
      %484 = vmatpush2.xpose.msra.mxu0 0.0
      %485 = vmatprep.subr.mxu0 0.0
      %486 = vmatpush2.xpose.msra.mxu0 0.0
      %487 = vmatprep.subr.mxu0 0.0
      %488 = vmatpush2.xpose.msra.mxu0 0.0
      %489 = vmatprep.subr.mxu0 0.0
      %490 = vmatpush2.xpose.msra.mxu0 0.0
      %491 = vmatprep.subr.mxu0 0.0
      %492 = vmatpush2.xpose.msra.mxu0 0.0
      %493 = vmatprep.subr.mxu0 0.0
      %494 = vmatpush2.xpose.msra.mxu0 0.0
      %495 = vmatprep.subr.mxu0 0.0
      %496 = vmatpush2.xpose.msra.mxu0 0.0
      %497 = vmatprep.subr.mxu0 0.0
      %498 = vmatpush2.xpose.msra.mxu0 0.0
      %499 = vmatprep.subr.mxu0 0.0
      %500 = vmatpush2.xpose.msra.mxu0 0.0
      %501 = vmatprep.subr.mxu0 0.0
      %502 = vmatpush2.xpose.msra.mxu0 0.0
      %503 = vmatprep.mubr.f32.mxu0 0.0
      %504 = vmatmul.mubr.f32.gmra.mxu0 %v434
      %v505 = vpop.f32.mrf.mxu0
      %v506 = vadd.f32 0.0, %v505
      %v507 = vpop.f32.mrf.mxu0
      %508 = vdwg.mxu0
      %v510 = vsel %vm356, %v350, 0
      %v513 = vsel %vm356, %v354, 0
      %515 = vmatprep.subr.mxu0 0.0
      %516 = vmatpush1.xpose.msra.mxu0 0.0
      %517 = vmatprep.subr.mxu0 0.0
      %518 = vmatpush1.xpose.msra.mxu0 0.0
      %519 = vmatprep.subr.mxu0 0.0
      %520 = vmatpush1.xpose.msra.mxu0 0.0
      %521 = vmatprep.subr.mxu0 0.0
      %522 = vmatpush1.xpose.msra.mxu0 0.0
      %523 = vmatprep.subr.mxu0 0.0
      %524 = vmatpush1.xpose.msra.mxu0 0.0
      %525 = vmatprep.subr.mxu0 0.0
      %526 = vmatpush1.xpose.msra.mxu0 0.0
      %527 = vmatprep.subr.mxu0 0.0
      %528 = vmatpush1.xpose.msra.mxu0 0.0
      %529 = vmatprep.subr.mxu0 0.0
      %530 = vmatpush1.xpose.msra.mxu0 0.0
      %531 = vmatprep.subr.mxu0 0.0
      %532 = vmatpush1.xpose.msra.mxu0 0.0
      %533 = vmatprep.subr.mxu0 0.0
      %534 = vmatpush1.xpose.msra.mxu0 0.0
      %535 = vmatprep.subr.mxu0 0.0
      %536 = vmatpush1.xpose.msra.mxu0 0.0
      %537 = vmatprep.subr.mxu0 0.0
      %538 = vmatpush1.xpose.msra.mxu0 0.0
      %539 = vmatprep.subr.mxu0 0.0
      %540 = vmatpush1.xpose.msra.mxu0 0.0
      %541 = vmatprep.subr.mxu0 0.0
      %542 = vmatpush1.xpose.msra.mxu0 0.0
      %543 = vmatprep.subr.mxu0 0.0
      %544 = vmatpush1.xpose.msra.mxu0 0.0
      %545 = vmatprep.subr.mxu0 0.0
      %546 = vmatpush1.xpose.msra.mxu0 %v513
      %547 = vmatprep.subr.mxu0 0.0
      %548 = vmatpush2.xpose.msra.mxu0 0.0
      %549 = vmatprep.subr.mxu0 0.0
      %550 = vmatpush2.xpose.msra.mxu0 0.0
      %551 = vmatprep.subr.mxu0 0.0
      %552 = vmatpush2.xpose.msra.mxu0 0.0
      %553 = vmatprep.subr.mxu0 0.0
      %554 = vmatpush2.xpose.msra.mxu0 0.0
      %555 = vmatprep.subr.mxu0 0.0
      %556 = vmatpush2.xpose.msra.mxu0 0.0
      %557 = vmatprep.subr.mxu0 0.0
      %558 = vmatpush2.xpose.msra.mxu0 0.0
      %559 = vmatprep.subr.mxu0 0.0
      %560 = vmatpush2.xpose.msra.mxu0 0.0
      %561 = vmatprep.subr.mxu0 0.0
      %562 = vmatpush2.xpose.msra.mxu0 0.0
      %563 = vmatprep.subr.mxu0 0.0
      %564 = vmatpush2.xpose.msra.mxu0 0.0
      %565 = vmatprep.subr.mxu0 0.0
      %566 = vmatpush2.xpose.msra.mxu0 0.0
      %567 = vmatprep.subr.mxu0 0.0
      %568 = vmatpush2.xpose.msra.mxu0 0.0
      %569 = vmatprep.subr.mxu0 0.0
      %570 = vmatpush2.xpose.msra.mxu0 0.0
      %571 = vmatprep.subr.mxu0 0.0
      %572 = vmatpush2.xpose.msra.mxu0 0.0
      %573 = vmatprep.subr.mxu0 0.0
      %574 = vmatpush2.xpose.msra.mxu0 0.0
      %575 = vmatprep.subr.mxu0 0.0
      %576 = vmatpush2.xpose.msra.mxu0 0.0
      %577 = vmatprep.subr.mxu0 0.0
      %578 = vmatpush2.xpose.msra.mxu0 0.0
      %579 = vmatprep.mubr.f32.mxu0 0.0
      %580 = vmatmul.mubr.f32.gmra.mxu0 %v510
      %v581 = vpop.f32.mrf.mxu0
      %v582 = vadd.f32 0.0, %v581
      %v583 = vpop.f32.mrf.mxu0
      %584 = vdwg.mxu0
      %v586 = vsel %vm356, %v351, 0
      %v589 = vsel %vm356, %v355, 0
      %591 = vmatprep.subr.mxu0 0.0
      %592 = vmatpush1.xpose.msra.mxu0 0.0
      %593 = vmatprep.subr.mxu0 0.0
      %594 = vmatpush1.xpose.msra.mxu0 0.0
      %595 = vmatprep.subr.mxu0 0.0
      %596 = vmatpush1.xpose.msra.mxu0 0.0
      %597 = vmatprep.subr.mxu0 0.0
      %598 = vmatpush1.xpose.msra.mxu0 0.0
      %599 = vmatprep.subr.mxu0 0.0
      %600 = vmatpush1.xpose.msra.mxu0 0.0
      %601 = vmatprep.subr.mxu0 0.0
      %602 = vmatpush1.xpose.msra.mxu0 0.0
      %603 = vmatprep.subr.mxu0 0.0
      %604 = vmatpush1.xpose.msra.mxu0 0.0
      %605 = vmatprep.subr.mxu0 0.0
      %606 = vmatpush1.xpose.msra.mxu0 0.0
      %607 = vmatprep.subr.mxu0 0.0
      %608 = vmatpush1.xpose.msra.mxu0 0.0
      %609 = vmatprep.subr.mxu0 0.0
      %610 = vmatpush1.xpose.msra.mxu0 0.0
      %611 = vmatprep.subr.mxu0 0.0
      %612 = vmatpush1.xpose.msra.mxu0 0.0
      %613 = vmatprep.subr.mxu0 0.0
      %614 = vmatpush1.xpose.msra.mxu0 0.0
      %615 = vmatprep.subr.mxu0 0.0
      %616 = vmatpush1.xpose.msra.mxu0 0.0
      %617 = vmatprep.subr.mxu0 0.0
      %618 = vmatpush1.xpose.msra.mxu0 0.0
      %619 = vmatprep.subr.mxu0 0.0
      %620 = vmatpush1.xpose.msra.mxu0 0.0
      %621 = vmatprep.subr.mxu0 0.0
      %622 = vmatpush1.xpose.msra.mxu0 %v589
      %623 = vmatprep.subr.mxu0 0.0
      %624 = vmatpush2.xpose.msra.mxu0 0.0
      %625 = vmatprep.subr.mxu0 0.0
      %626 = vmatpush2.xpose.msra.mxu0 0.0
      %627 = vmatprep.subr.mxu0 0.0
      %628 = vmatpush2.xpose.msra.mxu0 0.0
      %629 = vmatprep.subr.mxu0 0.0
      %630 = vmatpush2.xpose.msra.mxu0 0.0
      %631 = vmatprep.subr.mxu0 0.0
      %632 = vmatpush2.xpose.msra.mxu0 0.0
      %633 = vmatprep.subr.mxu0 0.0
      %634 = vmatpush2.xpose.msra.mxu0 0.0
      %635 = vmatprep.subr.mxu0 0.0
      %636 = vmatpush2.xpose.msra.mxu0 0.0
      %637 = vmatprep.subr.mxu0 0.0
      %638 = vmatpush2.xpose.msra.mxu0 0.0
      %639 = vmatprep.subr.mxu0 0.0
      %640 = vmatpush2.xpose.msra.mxu0 0.0
      %641 = vmatprep.subr.mxu0 0.0
      %642 = vmatpush2.xpose.msra.mxu0 0.0
      %643 = vmatprep.subr.mxu0 0.0
      %644 = vmatpush2.xpose.msra.mxu0 0.0
      %645 = vmatprep.subr.mxu0 0.0
      %646 = vmatpush2.xpose.msra.mxu0 0.0
      %647 = vmatprep.subr.mxu0 0.0
      %648 = vmatpush2.xpose.msra.mxu0 0.0
      %649 = vmatprep.subr.mxu0 0.0
      %650 = vmatpush2.xpose.msra.mxu0 0.0
      %651 = vmatprep.subr.mxu0 0.0
      %652 = vmatpush2.xpose.msra.mxu0 0.0
      %653 = vmatprep.subr.mxu0 0.0
      %654 = vmatpush2.xpose.msra.mxu0 0.0
      %655 = vmatprep.mubr.f32.mxu0 0.0
      %656 = vmatmul.mubr.f32.gmra.mxu0 %v586
      %v657 = vpop.f32.mrf.mxu0
      %v658 = vadd.f32 0.0, %v657
      %v659 = vpop.f32.mrf.mxu0
      %660 = vdwg.mxu0
      %v661 = vld [vmem:[%s293] sm:$0xff]
      %vm662 = vcmp.gt.f32.partialorder %v661, 0.0
      %v663 = vsel %vm662, 1, 0
      %vm664 = vcmp.eq.s32.totalorder %v663, 1
      %v665 = vsel %vm664, %v430, -1e+30
      %v666 = vsel %vm664, %v506, -1e+30
      %v667 = vsel %vm664, %v582, -1e+30
      %v668 = vsel %vm664, %v658, -1e+30
      %v669 = vld [vmem:[#allocation2] sm:$0xff]
      %v670 = vld [vmem:[#allocation2 + $0x8] sm:$0xff]
      %v671 = vld [vmem:[#allocation2 + $0x10] sm:$0xff]
      %v672 = vld [vmem:[#allocation2 + $0x18] sm:$0xff]
      %v673 = vsel %vm356, %v665, -inf
      %674 = vmax.xlane.f32.xlu0 %v673
      %v675 = vpop.xlane.xlu0 %674
      %v676 = vsel %vm356, %v666, -inf
      %677 = vmax.xlane.f32.xlu0 %v676
      %v678 = vpop.xlane.xlu0 %677
      %v679 = vsel %vm356, %v667, -inf
      %680 = vmax.xlane.f32.xlu0 %v679
      %v681 = vpop.xlane.xlu0 %680
      %v682 = vsel %vm356, %v668, -inf
      %683 = vmax.xlane.f32.xlu0 %v682
      %v684 = vpop.xlane.xlu0 %683
      %v685 = vmax.f32 %v669, %v675
      %v686 = vmax.f32 %v670, %v678
      %v687 = vmax.f32 %v671, %v681
      %v688 = vmax.f32 %v672, %v684
      %v689 = vsub.f32 %v669, %v685
      %v690 = vsub.f32 %v670, %v686
      %v691 = vsub.f32 %v671, %v687
      %v692 = vsub.f32 %v672, %v688
      %v693 = vmul.f32 %v689, 1.442695
      %v694 = vpow.pop %v693
      %v695 = vmul.f32 %v690, 1.442695
      %v696 = vpow.pop %v695
      %v697 = vmul.f32 %v691, 1.442695
      %v698 = vpow.pop %v697
      %v699 = vmul.f32 %v692, 1.442695
      %v700 = vpow.pop %v699
      %702 = vset.pattern.permute.xlu0 0
      %703 = vperm.xlu0 %702, %v685
      %v704 = vpop.permute.xlu0 %703
      %707 = vset.pattern.permute.xlu0 0
      %708 = vperm.xlu0 %707, %v686
      %v709 = vpop.permute.xlu0 %708
      %712 = vset.pattern.permute.xlu0 0
      %713 = vperm.xlu0 %712, %v687
      %v714 = vpop.permute.xlu0 %713
      %717 = vset.pattern.permute.xlu0 0
      %718 = vperm.xlu0 %717, %v688
      %v719 = vpop.permute.xlu0 %718
      %v721 = vsub.f32 %v665, %v704
      %v722 = vsub.f32 %v666, %v709
      %v723 = vsub.f32 %v667, %v714
      %v724 = vsub.f32 %v668, %v719
      %v725 = vmul.f32 %v721, 1.442695
      %v726 = vpow.pop %v725
      %v727 = vmul.f32 %v722, 1.442695
      %v728 = vpow.pop %v727
      %v729 = vmul.f32 %v723, 1.442695
      %v730 = vpow.pop %v729
      %v731 = vmul.f32 %v724, 1.442695
      %v732 = vpow.pop %v731
      %v733 = vld [vmem:[#allocation3] sm:$0xff]
      %v734 = vld [vmem:[#allocation3 + $0x8] sm:$0xff]
      %v735 = vld [vmem:[#allocation3 + $0x10] sm:$0xff]
      %v736 = vld [vmem:[#allocation3 + $0x18] sm:$0xff]
      %v737 = vmul.f32 %v694, %v733
      %v738 = vmul.f32 %v696, %v734
      %v739 = vmul.f32 %v698, %v735
      %v740 = vmul.f32 %v700, %v736
      %v741 = vsel %vm356, %v726, 0.0
      %742 = vadd.xlane.f32.xlu0 %v741
      %v743 = vpop.xlane.xlu0 %742
      %v744 = vsel %vm356, %v728, 0.0
      %745 = vadd.xlane.f32.xlu0 %v744
      %v746 = vpop.xlane.xlu0 %745
      %v747 = vsel %vm356, %v730, 0.0
      %748 = vadd.xlane.f32.xlu0 %v747
      %v749 = vpop.xlane.xlu0 %748
      %v750 = vsel %vm356, %v732, 0.0
      %751 = vadd.xlane.f32.xlu0 %v750
      %v752 = vpop.xlane.xlu0 %751
      %v753 = vadd.f32 %v737, %v743
      %v754 = vadd.f32 %v738, %v746
      %v755 = vadd.f32 %v739, %v749
      %v756 = vadd.f32 %v740, %v752
      %vm757 = vcmask 7168
      %758 = vst.msk [vmem:[#allocation3] sm:$0xff] %vm757, %v753
      %759 = vst.msk [vmem:[#allocation3 + $0x8] sm:$0xff] %vm757, %v754
      %760 = vst.msk [vmem:[#allocation3 + $0x10] sm:$0xff] %vm757, %v755
      %761 = vst.msk [vmem:[#allocation3 + $0x18] sm:$0xff] %vm757, %v756
      %v762 = vld [vmem:[%s317] sm:$0xff]
      %v763 = vld [vmem:[%s317 + $0x8] sm:$0xff]
      %v764 = vld [vmem:[%s317 + $0x10] sm:$0xff]
      %v765 = vld [vmem:[%s317 + $0x18] sm:$0xff]
      %v767 = vsel %vm356, %v726, 0
      %769 = vmatprep.subr.mxu0 0.0
      %770 = vmatpush1.msra.mxu0 0.0
      %771 = vmatprep.subr.mxu0 0.0
      %772 = vmatpush1.msra.mxu0 0.0
      %773 = vmatprep.subr.mxu0 0.0
      %774 = vmatpush1.msra.mxu0 0.0
      %775 = vmatprep.subr.mxu0 0.0
      %776 = vmatpush1.msra.mxu0 0.0
      %777 = vmatprep.subr.mxu0 0.0
      %778 = vmatpush1.msra.mxu0 0.0
      %779 = vmatprep.subr.mxu0 0.0
      %780 = vmatpush1.msra.mxu0 0.0
      %781 = vmatprep.subr.mxu0 0.0
      %782 = vmatpush1.msra.mxu0 0.0
      %783 = vmatprep.subr.mxu0 0.0
      %784 = vmatpush1.msra.mxu0 0.0
      %785 = vmatprep.subr.mxu0 0.0
      %786 = vmatpush1.msra.mxu0 0.0
      %787 = vmatprep.subr.mxu0 0.0
      %788 = vmatpush1.msra.mxu0 0.0
      %789 = vmatprep.subr.mxu0 0.0
      %790 = vmatpush1.msra.mxu0 0.0
      %791 = vmatprep.subr.mxu0 0.0
      %792 = vmatpush1.msra.mxu0 0.0
      %793 = vmatprep.subr.mxu0 0.0
      %794 = vmatpush1.msra.mxu0 0.0
      %795 = vmatprep.subr.mxu0 0.0
      %796 = vmatpush1.msra.mxu0 0.0
      %797 = vmatprep.subr.mxu0 0.0
      %798 = vmatpush1.msra.mxu0 0.0
      %799 = vmatprep.subr.mxu0 0.0
      %800 = vmatpush1.msra.mxu0 %v762
      %801 = vmatprep.subr.mxu0 0.0
      %802 = vmatpush2.msra.mxu0 0.0
      %803 = vmatprep.subr.mxu0 0.0
      %804 = vmatpush2.msra.mxu0 0.0
      %805 = vmatprep.subr.mxu0 0.0
      %806 = vmatpush2.msra.mxu0 0.0
      %807 = vmatprep.subr.mxu0 0.0
      %808 = vmatpush2.msra.mxu0 0.0
      %809 = vmatprep.subr.mxu0 0.0
      %810 = vmatpush2.msra.mxu0 0.0
      %811 = vmatprep.subr.mxu0 0.0
      %812 = vmatpush2.msra.mxu0 0.0
      %813 = vmatprep.subr.mxu0 0.0
      %814 = vmatpush2.msra.mxu0 0.0
      %815 = vmatprep.subr.mxu0 0.0
      %816 = vmatpush2.msra.mxu0 0.0
      %817 = vmatprep.subr.mxu0 0.0
      %818 = vmatpush2.msra.mxu0 0.0
      %819 = vmatprep.subr.mxu0 0.0
      %820 = vmatpush2.msra.mxu0 0.0
      %821 = vmatprep.subr.mxu0 0.0
      %822 = vmatpush2.msra.mxu0 0.0
      %823 = vmatprep.subr.mxu0 0.0
      %824 = vmatpush2.msra.mxu0 0.0
      %825 = vmatprep.subr.mxu0 0.0
      %826 = vmatpush2.msra.mxu0 0.0
      %827 = vmatprep.subr.mxu0 0.0
      %828 = vmatpush2.msra.mxu0 0.0
      %829 = vmatprep.subr.mxu0 0.0
      %830 = vmatpush2.msra.mxu0 0.0
      %831 = vmatprep.subr.mxu0 0.0
      %832 = vmatpush2.msra.mxu0 0.0
      %833 = vmatprep.mubr.f32.mxu0 0.0
      %834 = vmatmul.mubr.f32.gmra.mxu0 %v767
      %v835 = vpop.f32.mrf.mxu0
      %v836 = vadd.f32 0.0, %v835
      %v837 = vpop.f32.mrf.mxu0
      %838 = vdwg.mxu0
      %v840 = vsel %vm356, %v728, 0
      %842 = vmatprep.subr.mxu0 0.0
      %843 = vmatpush1.msra.mxu0 0.0
      %844 = vmatprep.subr.mxu0 0.0
      %845 = vmatpush1.msra.mxu0 0.0
      %846 = vmatprep.subr.mxu0 0.0
      %847 = vmatpush1.msra.mxu0 0.0
      %848 = vmatprep.subr.mxu0 0.0
      %849 = vmatpush1.msra.mxu0 0.0
      %850 = vmatprep.subr.mxu0 0.0
      %851 = vmatpush1.msra.mxu0 0.0
      %852 = vmatprep.subr.mxu0 0.0
      %853 = vmatpush1.msra.mxu0 0.0
      %854 = vmatprep.subr.mxu0 0.0
      %855 = vmatpush1.msra.mxu0 0.0
      %856 = vmatprep.subr.mxu0 0.0
      %857 = vmatpush1.msra.mxu0 0.0
      %858 = vmatprep.subr.mxu0 0.0
      %859 = vmatpush1.msra.mxu0 0.0
      %860 = vmatprep.subr.mxu0 0.0
      %861 = vmatpush1.msra.mxu0 0.0
      %862 = vmatprep.subr.mxu0 0.0
      %863 = vmatpush1.msra.mxu0 0.0
      %864 = vmatprep.subr.mxu0 0.0
      %865 = vmatpush1.msra.mxu0 0.0
      %866 = vmatprep.subr.mxu0 0.0
      %867 = vmatpush1.msra.mxu0 0.0
      %868 = vmatprep.subr.mxu0 0.0
      %869 = vmatpush1.msra.mxu0 0.0
      %870 = vmatprep.subr.mxu0 0.0
      %871 = vmatpush1.msra.mxu0 0.0
      %872 = vmatprep.subr.mxu0 0.0
      %873 = vmatpush1.msra.mxu0 %v763
      %874 = vmatprep.subr.mxu0 0.0
      %875 = vmatpush2.msra.mxu0 0.0
      %876 = vmatprep.subr.mxu0 0.0
      %877 = vmatpush2.msra.mxu0 0.0
      %878 = vmatprep.subr.mxu0 0.0
      %879 = vmatpush2.msra.mxu0 0.0
      %880 = vmatprep.subr.mxu0 0.0
      %881 = vmatpush2.msra.mxu0 0.0
      %882 = vmatprep.subr.mxu0 0.0
      %883 = vmatpush2.msra.mxu0 0.0
      %884 = vmatprep.subr.mxu0 0.0
      %885 = vmatpush2.msra.mxu0 0.0
      %886 = vmatprep.subr.mxu0 0.0
      %887 = vmatpush2.msra.mxu0 0.0
      %888 = vmatprep.subr.mxu0 0.0
      %889 = vmatpush2.msra.mxu0 0.0
      %890 = vmatprep.subr.mxu0 0.0
      %891 = vmatpush2.msra.mxu0 0.0
      %892 = vmatprep.subr.mxu0 0.0
      %893 = vmatpush2.msra.mxu0 0.0
      %894 = vmatprep.subr.mxu0 0.0
      %895 = vmatpush2.msra.mxu0 0.0
      %896 = vmatprep.subr.mxu0 0.0
      %897 = vmatpush2.msra.mxu0 0.0
      %898 = vmatprep.subr.mxu0 0.0
      %899 = vmatpush2.msra.mxu0 0.0
      %900 = vmatprep.subr.mxu0 0.0
      %901 = vmatpush2.msra.mxu0 0.0
      %902 = vmatprep.subr.mxu0 0.0
      %903 = vmatpush2.msra.mxu0 0.0
      %904 = vmatprep.subr.mxu0 0.0
      %905 = vmatpush2.msra.mxu0 0.0
      %906 = vmatprep.mubr.f32.mxu0 0.0
      %907 = vmatmul.mubr.f32.gmra.mxu0 %v840
      %v908 = vpop.f32.mrf.mxu0
      %v909 = vadd.f32 0.0, %v908
      %v910 = vpop.f32.mrf.mxu0
      %911 = vdwg.mxu0
      %v913 = vsel %vm356, %v730, 0
      %915 = vmatprep.subr.mxu0 0.0
      %916 = vmatpush1.msra.mxu0 0.0
      %917 = vmatprep.subr.mxu0 0.0
      %918 = vmatpush1.msra.mxu0 0.0
      %919 = vmatprep.subr.mxu0 0.0
      %920 = vmatpush1.msra.mxu0 0.0
      %921 = vmatprep.subr.mxu0 0.0
      %922 = vmatpush1.msra.mxu0 0.0
      %923 = vmatprep.subr.mxu0 0.0
      %924 = vmatpush1.msra.mxu0 0.0
      %925 = vmatprep.subr.mxu0 0.0
      %926 = vmatpush1.msra.mxu0 0.0
      %927 = vmatprep.subr.mxu0 0.0
      %928 = vmatpush1.msra.mxu0 0.0
      %929 = vmatprep.subr.mxu0 0.0
      %930 = vmatpush1.msra.mxu0 0.0
      %931 = vmatprep.subr.mxu0 0.0
      %932 = vmatpush1.msra.mxu0 0.0
      %933 = vmatprep.subr.mxu0 0.0
      %934 = vmatpush1.msra.mxu0 0.0
      %935 = vmatprep.subr.mxu0 0.0
      %936 = vmatpush1.msra.mxu0 0.0
      %937 = vmatprep.subr.mxu0 0.0
      %938 = vmatpush1.msra.mxu0 0.0
      %939 = vmatprep.subr.mxu0 0.0
      %940 = vmatpush1.msra.mxu0 0.0
      %941 = vmatprep.subr.mxu0 0.0
      %942 = vmatpush1.msra.mxu0 0.0
      %943 = vmatprep.subr.mxu0 0.0
      %944 = vmatpush1.msra.mxu0 0.0
      %945 = vmatprep.subr.mxu0 0.0
      %946 = vmatpush1.msra.mxu0 %v764
      %947 = vmatprep.subr.mxu0 0.0
      %948 = vmatpush2.msra.mxu0 0.0
      %949 = vmatprep.subr.mxu0 0.0
      %950 = vmatpush2.msra.mxu0 0.0
      %951 = vmatprep.subr.mxu0 0.0
      %952 = vmatpush2.msra.mxu0 0.0
      %953 = vmatprep.subr.mxu0 0.0
      %954 = vmatpush2.msra.mxu0 0.0
      %955 = vmatprep.subr.mxu0 0.0
      %956 = vmatpush2.msra.mxu0 0.0
      %957 = vmatprep.subr.mxu0 0.0
      %958 = vmatpush2.msra.mxu0 0.0
      %959 = vmatprep.subr.mxu0 0.0
      %960 = vmatpush2.msra.mxu0 0.0
      %961 = vmatprep.subr.mxu0 0.0
      %962 = vmatpush2.msra.mxu0 0.0
      %963 = vmatprep.subr.mxu0 0.0
      %964 = vmatpush2.msra.mxu0 0.0
      %965 = vmatprep.subr.mxu0 0.0
      %966 = vmatpush2.msra.mxu0 0.0
      %967 = vmatprep.subr.mxu0 0.0
      %968 = vmatpush2.msra.mxu0 0.0
      %969 = vmatprep.subr.mxu0 0.0
      %970 = vmatpush2.msra.mxu0 0.0
      %971 = vmatprep.subr.mxu0 0.0
      %972 = vmatpush2.msra.mxu0 0.0
      %973 = vmatprep.subr.mxu0 0.0
      %974 = vmatpush2.msra.mxu0 0.0
      %975 = vmatprep.subr.mxu0 0.0
      %976 = vmatpush2.msra.mxu0 0.0
      %977 = vmatprep.subr.mxu0 0.0
      %978 = vmatpush2.msra.mxu0 0.0
      %979 = vmatprep.mubr.f32.mxu0 0.0
      %980 = vmatmul.mubr.f32.gmra.mxu0 %v913
      %v981 = vpop.f32.mrf.mxu0
      %v982 = vadd.f32 0.0, %v981
      %v983 = vpop.f32.mrf.mxu0
      %984 = vdwg.mxu0
      %v986 = vsel %vm356, %v732, 0
      %988 = vmatprep.subr.mxu0 0.0
      %989 = vmatpush1.msra.mxu0 0.0
      %990 = vmatprep.subr.mxu0 0.0
      %991 = vmatpush1.msra.mxu0 0.0
      %992 = vmatprep.subr.mxu0 0.0
      %993 = vmatpush1.msra.mxu0 0.0
      %994 = vmatprep.subr.mxu0 0.0
      %995 = vmatpush1.msra.mxu0 0.0
      %996 = vmatprep.subr.mxu0 0.0
      %997 = vmatpush1.msra.mxu0 0.0
      %998 = vmatprep.subr.mxu0 0.0
      %999 = vmatpush1.msra.mxu0 0.0
      %1000 = vmatprep.subr.mxu0 0.0
      %1001 = vmatpush1.msra.mxu0 0.0
      %1002 = vmatprep.subr.mxu0 0.0
      %1003 = vmatpush1.msra.mxu0 0.0
      %1004 = vmatprep.subr.mxu0 0.0
      %1005 = vmatpush1.msra.mxu0 0.0
      %1006 = vmatprep.subr.mxu0 0.0
      %1007 = vmatpush1.msra.mxu0 0.0
      %1008 = vmatprep.subr.mxu0 0.0
      %1009 = vmatpush1.msra.mxu0 0.0
      %1010 = vmatprep.subr.mxu0 0.0
      %1011 = vmatpush1.msra.mxu0 0.0
      %1012 = vmatprep.subr.mxu0 0.0
      %1013 = vmatpush1.msra.mxu0 0.0
      %1014 = vmatprep.subr.mxu0 0.0
      %1015 = vmatpush1.msra.mxu0 0.0
      %1016 = vmatprep.subr.mxu0 0.0
      %1017 = vmatpush1.msra.mxu0 0.0
      %1018 = vmatprep.subr.mxu0 0.0
      %1019 = vmatpush1.msra.mxu0 %v765
      %1020 = vmatprep.subr.mxu0 0.0
      %1021 = vmatpush2.msra.mxu0 0.0
      %1022 = vmatprep.subr.mxu0 0.0
      %1023 = vmatpush2.msra.mxu0 0.0
      %1024 = vmatprep.subr.mxu0 0.0
      %1025 = vmatpush2.msra.mxu0 0.0
      %1026 = vmatprep.subr.mxu0 0.0
      %1027 = vmatpush2.msra.mxu0 0.0
      %1028 = vmatprep.subr.mxu0 0.0
      %1029 = vmatpush2.msra.mxu0 0.0
      %1030 = vmatprep.subr.mxu0 0.0
      %1031 = vmatpush2.msra.mxu0 0.0
      %1032 = vmatprep.subr.mxu0 0.0
      %1033 = vmatpush2.msra.mxu0 0.0
      %1034 = vmatprep.subr.mxu0 0.0
      %1035 = vmatpush2.msra.mxu0 0.0
      %1036 = vmatprep.subr.mxu0 0.0
      %1037 = vmatpush2.msra.mxu0 0.0
      %1038 = vmatprep.subr.mxu0 0.0
      %1039 = vmatpush2.msra.mxu0 0.0
      %1040 = vmatprep.subr.mxu0 0.0
      %1041 = vmatpush2.msra.mxu0 0.0
      %1042 = vmatprep.subr.mxu0 0.0
      %1043 = vmatpush2.msra.mxu0 0.0
      %1044 = vmatprep.subr.mxu0 0.0
      %1045 = vmatpush2.msra.mxu0 0.0
      %1046 = vmatprep.subr.mxu0 0.0
      %1047 = vmatpush2.msra.mxu0 0.0
      %1048 = vmatprep.subr.mxu0 0.0
      %1049 = vmatpush2.msra.mxu0 0.0
      %1050 = vmatprep.subr.mxu0 0.0
      %1051 = vmatpush2.msra.mxu0 0.0
      %1052 = vmatprep.mubr.f32.mxu0 0.0
      %1053 = vmatmul.mubr.f32.gmra.mxu0 %v986
      %v1054 = vpop.f32.mrf.mxu0
      %v1055 = vadd.f32 0.0, %v1054
      %v1056 = vpop.f32.mrf.mxu0
      %1057 = vdwg.mxu0
      %v1058 = vld [vmem:[#allocation4] sm:$0xff]
      %v1059 = vld [vmem:[#allocation4 + $0x8] sm:$0xff]
      %v1060 = vld [vmem:[#allocation4 + $0x10] sm:$0xff]
      %v1061 = vld [vmem:[#allocation4 + $0x18] sm:$0xff]
      %1063 = vset.pattern.permute.xlu0 0
      %1064 = vperm.xlu0 %1063, %v694
      %v1065 = vpop.permute.xlu0 %1064
      %1068 = vset.pattern.permute.xlu0 0
      %1069 = vperm.xlu0 %1068, %v696
      %v1070 = vpop.permute.xlu0 %1069
      %1073 = vset.pattern.permute.xlu0 0
      %1074 = vperm.xlu0 %1073, %v698
      %v1075 = vpop.permute.xlu0 %1074
      %1078 = vset.pattern.permute.xlu0 0
      %1079 = vperm.xlu0 %1078, %v700
      %v1080 = vpop.permute.xlu0 %1079
      %v1082 = vmul.f32 %v1065, %v1058
      %v1083 = vmul.f32 %v1070, %v1059
      %v1084 = vmul.f32 %v1075, %v1060
      %v1085 = vmul.f32 %v1080, %v1061
      %v1086 = vadd.f32 %v1082, %v836
      %v1087 = vadd.f32 %v1083, %v909
      %v1088 = vadd.f32 %v1084, %v982
      %v1089 = vadd.f32 %v1085, %v1055
      %1090 = vst.msk [vmem:[#allocation4] sm:$0xff] %vm356, %v1086
      %1091 = vst.msk [vmem:[#allocation4 + $0x8] sm:$0xff] %vm356, %v1087
      %1092 = vst.msk [vmem:[#allocation4 + $0x10] sm:$0xff] %vm356, %v1088
      %1093 = vst.msk [vmem:[#allocation4 + $0x18] sm:$0xff] %vm356, %v1089
      %1094 = vst.msk [vmem:[#allocation2] sm:$0xff] %vm757, %v685
      %1095 = vst.msk [vmem:[#allocation2 + $0x8] sm:$0xff] %vm757, %v686
      %1096 = vst.msk [vmem:[#allocation2 + $0x10] sm:$0xff] %vm757, %v687
      %1097 = vst.msk [vmem:[#allocation2 + $0x18] sm:$0xff] %vm757, %v688
      // Predicated region
      $region41: #{causal_self_attention.4} parent=35 // pred_check
        %p1098 = pneg %p326
      $region42: #{causal_self_attention.4} parent=35 // pred_check_branch
        %1100 = sbr.rel (%p1098) target = $region44
      $region43: #{causal_self_attention.4} parent=35 // pred_region
        %v1101 = vld [vmem:[#allocation3] sm:$0xff]
        %v1102 = vld [vmem:[#allocation3 + $0x8] sm:$0xff]
        %v1103 = vld [vmem:[#allocation3 + $0x10] sm:$0xff]
        %v1104 = vld [vmem:[#allocation3 + $0x18] sm:$0xff]
        %v1105 = vrcp.pop %v1101
        %v1106 = vrcp.pop %v1102
        %v1107 = vrcp.pop %v1103
        %v1108 = vrcp.pop %v1104
        %v1109 = vld [vmem:[#allocation4] sm:$0xff]
        %v1110 = vld [vmem:[#allocation4 + $0x8] sm:$0xff]
        %v1111 = vld [vmem:[#allocation4 + $0x10] sm:$0xff]
        %v1112 = vld [vmem:[#allocation4 + $0x18] sm:$0xff]
        %1114 = vset.pattern.permute.xlu0 0
        %1115 = vperm.xlu0 %1114, %v1105
        %v1116 = vpop.permute.xlu0 %1115
        %1119 = vset.pattern.permute.xlu0 0
        %1120 = vperm.xlu0 %1119, %v1106
        %v1121 = vpop.permute.xlu0 %1120
        %1124 = vset.pattern.permute.xlu0 0
        %1125 = vperm.xlu0 %1124, %v1107
        %v1126 = vpop.permute.xlu0 %1125
        %1129 = vset.pattern.permute.xlu0 0
        %1130 = vperm.xlu0 %1129, %v1108
        %v1131 = vpop.permute.xlu0 %1130
        %v1133 = vmul.f32 %v1109, %v1116
        %v1134 = vmul.f32 %v1110, %v1121
        %v1135 = vmul.f32 %v1111, %v1126
        %v1136 = vmul.f32 %v1112, %v1131
        %1137 = vst.msk [vmem:[%s325] sm:$0xff] %vm356, %v1133
        %1138 = vst.msk [vmem:[%s325 + $0x8] sm:$0xff] %vm356, %v1134
        %1139 = vst.msk [vmem:[%s325 + $0x10] sm:$0xff] %vm356, %v1135
        %1140 = vst.msk [vmem:[%s325 + $0x18] sm:$0xff] %vm356, %v1136
      $region44: #{causal_self_attention.4} parent=35 // pred_fallthru
        _
      %p1141 = scmp.lt.s32.totalorder %s20, 1
      %s1142 = scalar_select %p1141, %s20, 1
      %p1143 = scmp.lt.s32.totalorder %s21, 0
      %s1144 = scalar_select %p1143, %s21, 0
      %s1145 = smul.addr %s1142, 4
      %s1146 = sadd.s32 %s1144, %s1145
      %s1147 = smul.addr %s1146, 8
      %s1148 = scalar_lea.vmem %s4, %s1147
      // Predicated region
      $region45: #{causal_self_attention.4} parent=35 // pred_check
        %p1149 = pneg %p166
      $region46: #{causal_self_attention.4} parent=35 // pred_check_branch
        %1151 = sbr.rel (%p1149) target = $region48
      $region47: #{causal_self_attention.4} parent=35 // pred_region
        _
      $region48: #{causal_self_attention.4} parent=35 // pred_fallthru
        _
    $region36: #{causal_self_attention.4} parent=5 // pred_fallthru
      _
    %p1152 = scmp.le.s32.totalorder 2, %s10
    // Predicated region
    $region49: #{causal_self_attention.4} parent=5 // pred_check
      %p1153 = pneg %p1152
    $region50: #{causal_self_attention.4} parent=5 // pred_check_branch
      %1155 = sbr.rel (%p1153) target = $region52
    $region51: #{causal_self_attention.4} parent=5 // pred_region
      %s1156 = ssub.s32 %s10, 2
      // Predicated region
      $region53: #{causal_self_attention.4} parent=51 // pred_check
        %p1157 = pneg %p172
      $region54: #{causal_self_attention.4} parent=51 // pred_check_branch
        %1159 = sbr.rel (%p1157) target = $region56
      $region55: #{causal_self_attention.4} parent=51 // pred_region
        %p1160 = scmp.lt.s32.totalorder %s23, 1
        %s1161 = scalar_select %p1160, %s23, 1
        %p1162 = scmp.lt.s32.totalorder %s24, 0
        %s1163 = scalar_select %p1162, %s24, 0
        %s1164 = smul.addr %s1161, 4
        %s1165 = sadd.s32 %s1163, %s1164
        %s1166 = smul.addr %s1165, 8
        %s1167 = scalar_lea.vmem %s4, %s1166
      $region56: #{causal_self_attention.4} parent=51 // pred_fallthru
        _
    $region52: #{causal_self_attention.4} parent=5 // pred_fallthru
      _
  $region6: #{causal_self_attention.4} parent=0 // loop_footer
    %s14 = sadd.s32 1, %s10
  $region7: #{causal_self_attention.4} parent=0 // loop_footer_branch
    %9 = sbr.rel target = $region3
  $region8: #{causal_self_attention.4} parent=0 // loop_exit
    _

</llo_original>
